<compile_context>
chip_gen: v7x
topology: tpu7x:2x2x1
jax: 0.10.0
libtpu: 0.0.40
codegen_flags: <defaults>
</compile_context>

<pallas_src>
import functools
import math

import jax
import jax.numpy as jnp
from jax import lax
from jax.experimental import pallas as pl
from jax.experimental.pallas import tpu as pltpu


def _mha_kernel(q_ref, k_ref, v_ref,
                wq_ref, bq_ref, wk_ref, bk_ref, wv_ref, bv_ref,
                wo_ref, bo_ref,
                out_ref,
                qp_sc, m_sc, l_sc, acc_sc,
                *, h, d_k):
    """Fused QKV projection + multi-head attention + output projection.

    grid = (batch, q_blocks, kv_blocks); the kv axis (innermost) is the online
    softmax reduction. Per-head running max / denom and the un-normalized
    context live in VMEM scratch that persists across kv steps.
    """
    ki = pl.program_id(2)
    nk = pl.num_programs(2)
    scale = 1.0 / math.sqrt(d_k)

    # ---- init at the first kv step of each (batch, q-block) ----------------
    @pl.when(ki == 0)
    def _init():
        q = q_ref[0].astype(jnp.bfloat16)                        # (TQ, D)
        qp = jnp.dot(q, wq_ref[...], preferred_element_type=jnp.float32)
        qp = (qp + bq_ref[...]) * scale                          # fold 1/sqrt(d_k)
        qp_sc[...] = qp.astype(jnp.bfloat16)
        m_sc[...] = jnp.full(m_sc.shape, -jnp.inf, jnp.float32)
        l_sc[...] = jnp.zeros(l_sc.shape, jnp.float32)
        acc_sc[...] = jnp.zeros(acc_sc.shape, jnp.float32)

    # ---- project this K/V tile (bf16 MXU operands, f32 accumulation) -------
    k = k_ref[0].astype(jnp.bfloat16)                            # (TKV, D)
    v = v_ref[0].astype(jnp.bfloat16)
    kp = jnp.dot(k, wk_ref[...], preferred_element_type=jnp.float32) + bk_ref[...]
    vp = jnp.dot(v, wv_ref[...], preferred_element_type=jnp.float32) + bv_ref[...]
    kp = kp.astype(jnp.bfloat16)
    vp = vp.astype(jnp.bfloat16)

    # ---- per-head online softmax (h is static -> unrolled at trace time) ---
    for hi in range(h):
        lo = hi * d_k
        qh = qp_sc[:, lo:lo + d_k]                               # (TQ,  d_k) bf16
        kh = kp[:, lo:lo + d_k]                                  # (TKV, d_k) bf16
        vh = vp[:, lo:lo + d_k]                                  # (TKV, d_k) bf16

        # scores (TQ, TKV): contract the last dims of q and k on the MXU.
        # TODO(synk): inspect lowered MLIR for a per-head XLU transpose of kh;
        #             if present, hoist one (TKV, D)->(D, TKV) transpose per step.
        s = lax.dot_general(qh, kh, (((1,), (1,)), ((), ())),
                            preferred_element_type=jnp.float32)

        m_prev = m_sc[hi]                                        # (TQ, 1)
        m_new = jnp.maximum(m_prev, jnp.max(s, axis=-1, keepdims=True))
        alpha = jnp.exp(m_prev - m_new)
        p = jnp.exp(s - m_new)                                   # un-normalized
        l_sc[hi] = alpha * l_sc[hi] + jnp.sum(p, axis=-1, keepdims=True)
        acc_sc[:, lo:lo + d_k] = (
            alpha * acc_sc[:, lo:lo + d_k]
            + jnp.dot(p.astype(jnp.bfloat16), vh,
                      preferred_element_type=jnp.float32))
        m_sc[hi] = m_new

    # ---- finalize: deferred normalization + concat-free output projection --
    @pl.when(ki == nk - 1)
    def _finalize():
        for hi in range(h):
            lo = hi * d_k
            inv = pl.reciprocal(l_sc[hi], approx=True)           # EUP slot, (TQ, 1)
            acc_sc[:, lo:lo + d_k] = acc_sc[:, lo:lo + d_k] * inv
        ctx = acc_sc[...].astype(jnp.bfloat16)                   # (TQ, D), heads in order
        out = jnp.dot(ctx, wo_ref[...], preferred_element_type=jnp.float32)
        out = out + bo_ref[...]
        out_ref[0] = out.astype(out_ref.dtype)


def multi_head_attention(q, k, v, params, *, h, tq=None, tkv=None):
    """q: (B, Sq, D); k, v: (B, Skv, D). params: dict of projection weights."""
    B, Sq, D = q.shape
    _, Skv, _ = k.shape
    assert D % h == 0
    assert D % 128 == 0, "d_model must be a multiple of 128 (lane-dense tiles)"
    assert Sq % 8 == 0 and Skv % 8 == 0, "sequence lengths must be multiples of 8"
    d_k = D // h

    # Tile sizes: >=256-row query tiles keep the 256-wide MXU busy on v6e/v7x
    # (128 is enough on v5e); the kv tile bounds per-step VMEM and score size.
    if tq is None:
        tq = min(Sq, 256)
    if tkv is None:
        tkv = min(Skv, 512)
    assert Sq % tq == 0 and Skv % tkv == 0
    grid = (B, Sq // tq, Skv // tkv)

    # bf16 weights: native MXU operand dtype, half the HBM->VMEM bytes and half
    # the VMEM residency. Biases stay f32 (added to the f32 accumulator).
    wq = params["wq"].astype(jnp.bfloat16)
    wk = params["wk"].astype(jnp.bfloat16)
    wv = params["wv"].astype(jnp.bfloat16)
    wo = params["wo"].astype(jnp.bfloat16)
    bq = params["bq"].reshape(1, D).astype(jnp.float32)
    bk = params["bk"].reshape(1, D).astype(jnp.float32)
    bv = params["bv"].reshape(1, D).astype(jnp.float32)
    bo = params["bo"].reshape(1, D).astype(jnp.float32)

    # Grid-invariant weights/biases: single-buffer (no refetch after step 0).
    w_spec = pl.BlockSpec((D, D), lambda b, qi, ki: (0, 0),
                          pipeline_mode=pl.Buffered(1))
    b_spec = pl.BlockSpec((1, D), lambda b, qi, ki: (0, 0),
                          pipeline_mode=pl.Buffered(1))

    # Explicit VMEM budget (bytes): double-buffered I/O tiles, single-buffered
    # weights, scratch, plus a rough allowance for in-flight temporaries.
    isz = jnp.dtype(q.dtype).itemsize
    vmem_bytes = (
        2 * tq * D * isz                  # q block (double-buffered)
        + 2 * 2 * tkv * D * isz           # k, v blocks (double-buffered)
        + 2 * tq * D * isz                # out block (double-buffered)
        + 4 * D * D * 2 + 4 * D * 4       # weights (bf16, 1x) + biases (f32)
        + tq * D * 2                      # qp scratch (bf16)
        + 2 * h * tq * 128 * 4            # m / l scratch (lane-padded f32)
        + tq * D * 4                      # acc scratch (f32)
        + 4 * tq * tkv * 4                # live score / exp temporaries
        + 4 * tkv * D * 4                 # kp / vp projection temporaries
    )
    vmem_limit = int(min(max(2 * vmem_bytes, 32 * 1024 * 1024), 64 * 1024 * 1024))

    return pl.pallas_call(
        functools.partial(_mha_kernel, h=h, d_k=d_k),
        out_shape=jax.ShapeDtypeStruct((B, Sq, D), q.dtype),
        grid=grid,
        in_specs=[
            pl.BlockSpec((1, tq, D), lambda b, qi, ki: (b, qi, 0)),    # q
            pl.BlockSpec((1, tkv, D), lambda b, qi, ki: (b, ki, 0)),   # k
            pl.BlockSpec((1, tkv, D), lambda b, qi, ki: (b, ki, 0)),   # v
            w_spec, b_spec,   # Wq, bq
            w_spec, b_spec,   # Wk, bk
            w_spec, b_spec,   # Wv, bv
            w_spec, b_spec,   # Wo, bo
        ],
        out_specs=pl.BlockSpec((1, tq, D), lambda b, qi, ki: (b, qi, 0)),
        scratch_shapes=[
            pltpu.VMEM((tq, D), jnp.bfloat16),     # projected + scaled q tile
            pltpu.VMEM((h, tq, 1), jnp.float32),   # running max (per head)
            pltpu.VMEM((h, tq, 1), jnp.float32),   # running denom (per head)
            pltpu.VMEM((tq, D), jnp.float32),      # un-normalized context
        ],
        compiler_params=pltpu.CompilerParams(
            # batch and q-block axes are independent (megacore on v7x);
            # kv axis is the softmax reduction.
            dimension_semantics=("parallel", "parallel", "arbitrary"),
            vmem_limit_bytes=vmem_limit,
        ),
    )(q, k, v, wq, bq, wk, bk, wv, bv, wo, bo)


def mha_reference(q, k, v, params, *, h):
    """Pure-JAX reference (matches the PyTorch forward with dropout/mask off)."""
    B, Sq, D = q.shape
    d_k = D // h
    hp = lax.Precision.HIGHEST

    def proj(x, w, b):
        return jnp.einsum("bsd,df->bsf", x, w, precision=hp) + b

    qp = proj(q, params["wq"], params["bq"]).reshape(B, Sq, h, d_k).transpose(0, 2, 1, 3)
    kp = proj(k, params["wk"], params["bk"]).reshape(B, -1, h, d_k).transpose(0, 2, 1, 3)
    vp = proj(v, params["wv"], params["bv"]).reshape(B, -1, h, d_k).transpose(0, 2, 1, 3)
    scores = jnp.einsum("bhqd,bhkd->bhqk", qp, kp, precision=hp) / math.sqrt(d_k)
    p = jax.nn.softmax(scores, axis=-1)
    ctx = jnp.einsum("bhqk,bhkd->bhqd", p, vp, precision=hp)
    ctx = ctx.transpose(0, 2, 1, 3).reshape(B, Sq, D)
    return jnp.einsum("bsd,df->bsf", ctx, params["wo"], precision=hp) + params["bo"]


if __name__ == "__main__":
    batch, seq, d_model, h = 2, 32, 128, 4      # small, (8,128)-aligned
    tq, tkv = 16, 16                            # exercises the (B, nq, nkv)=(2,2,2) grid

    key = jax.random.PRNGKey(0)
    keys = jax.random.split(key, 11)
    bound = 1.0 / math.sqrt(d_model)            # nn.Linear-style uniform init

    def uinit(kk, shape):
        return jax.random.uniform(kk, shape, jnp.float32, -bound, bound)

    params = {
        "wq": uinit(keys[0], (d_model, d_model)), "bq": uinit(keys[1], (d_model,)),
        "wk": uinit(keys[2], (d_model, d_model)), "bk": uinit(keys[3], (d_model,)),
        "wv": uinit(keys[4], (d_model, d_model)), "bv": uinit(keys[5], (d_model,)),
        "wo": uinit(keys[6], (d_model, d_model)), "bo": uinit(keys[7], (d_model,)),
    }
    q = jax.random.normal(keys[8], (batch, seq, d_model), jnp.float32)
    k = jax.random.normal(keys[9], (batch, seq, d_model), jnp.float32)
    v = jax.random.normal(keys[10], (batch, seq, d_model), jnp.float32)

    out = multi_head_attention(q, k, v, params, h=h, tq=tq, tkv=tkv)
    out = jax.block_until_ready(out)

    ref = mha_reference(q, k, v, params, h=h)
    assert out.shape == (batch, seq, d_model)
    max_err = float(jnp.max(jnp.abs(out - ref)))
    # bf16 MXU operands -> slightly looser tolerance than the f32 HIGHEST reference.
    assert jnp.allclose(out, ref, atol=3e-2, rtol=3e-2), f"max abs err {max_err}"

    print("KERNEL_OK")
</pallas_src>

<mosaic_0001>
module attributes {stable_mosaic.version = 11 : i64} {
  func.func @_mha_kernel(%arg0: i32, %arg1: i32, %arg2: i32, %arg3: memref<1x16x128xf32, #tpu.memory_space<vmem>>, %arg4: memref<1x16x128xf32, #tpu.memory_space<vmem>>, %arg5: memref<1x16x128xf32, #tpu.memory_space<vmem>>, %arg6: memref<128x128xbf16, #tpu.memory_space<vmem>>, %arg7: memref<1x128xf32, #tpu.memory_space<vmem>>, %arg8: memref<128x128xbf16, #tpu.memory_space<vmem>>, %arg9: memref<1x128xf32, #tpu.memory_space<vmem>>, %arg10: memref<128x128xbf16, #tpu.memory_space<vmem>>, %arg11: memref<1x128xf32, #tpu.memory_space<vmem>>, %arg12: memref<128x128xbf16, #tpu.memory_space<vmem>>, %arg13: memref<1x128xf32, #tpu.memory_space<vmem>>, %arg14: memref<1x16x128xf32, #tpu.memory_space<vmem>>, %arg15: memref<16x128xbf16, #tpu.memory_space<vmem>>, %arg16: memref<4x16x1xf32, #tpu.memory_space<vmem>>, %arg17: memref<4x16x1xf32, #tpu.memory_space<vmem>>, %arg18: memref<16x128xf32, #tpu.memory_space<vmem>>) attributes {dimension_semantics = [#tpu.dimension_semantics<parallel>, #tpu.dimension_semantics<parallel>, #tpu.dimension_semantics<arbitrary>], iteration_bounds = array<i64: 2, 2, 2>, scalar_prefetch = 0 : i64, scratch_operands = 4 : i64, tpu.core_type = #tpu.core_type<tc>, window_params = [{transform_indices = @transform_0, window_bounds = array<i64: 1, 16, 128>}, {transform_indices = @transform_1, window_bounds = array<i64: 1, 16, 128>}, {transform_indices = @transform_2, window_bounds = array<i64: 1, 16, 128>}, {pipeline_mode = #tpu.pipeline_mode<synchronous>, transform_indices = @transform_3, window_bounds = array<i64: 128, 128>}, {pipeline_mode = #tpu.pipeline_mode<synchronous>, transform_indices = @transform_4, window_bounds = array<i64: 1, 128>}, {pipeline_mode = #tpu.pipeline_mode<synchronous>, transform_indices = @transform_5, window_bounds = array<i64: 128, 128>}, {pipeline_mode = #tpu.pipeline_mode<synchronous>, transform_indices = @transform_6, window_bounds = array<i64: 1, 128>}, {pipeline_mode = #tpu.pipeline_mode<synchronous>, transform_indices = @transform_7, window_bounds = array<i64: 128, 128>}, {pipeline_mode = #tpu.pipeline_mode<synchronous>, transform_indices = @transform_8, window_bounds = array<i64: 1, 128>}, {pipeline_mode = #tpu.pipeline_mode<synchronous>, transform_indices = @transform_9, window_bounds = array<i64: 128, 128>}, {pipeline_mode = #tpu.pipeline_mode<synchronous>, transform_indices = @transform_10, window_bounds = array<i64: 1, 128>}, {transform_indices = @transform_11, window_bounds = array<i64: 1, 16, 128>}]} {
    %c0_i32 = arith.constant 0 : i32
    %0 = arith.cmpi eq, %arg2, %c0_i32 : i32
    %1 = arith.extui %0 : i1 to i32
    %c0_i32_0 = arith.constant 0 : i32
    %2 = arith.cmpi ne, %1, %c0_i32_0 : i32
    scf.if %2 {
      %c0_98 = arith.constant 0 : index
      %c0_99 = arith.constant 0 : index
      %c0_100 = arith.constant 0 : index
      %156 = vector.load %arg3[%c0_98, %c0_99, %c0_100] : memref<1x16x128xf32, #tpu.memory_space<vmem>>, vector<1x16x128xf32>
      %157 = vector.shape_cast %156 : vector<1x16x128xf32> to vector<16x128xf32>
      %158 = arith.truncf %157 : vector<16x128xf32> to vector<16x128xbf16>
      %c0_101 = arith.constant 0 : index
      %c0_102 = arith.constant 0 : index
      %159 = vector.load %arg6[%c0_101, %c0_102] : memref<128x128xbf16, #tpu.memory_space<vmem>>, vector<128x128xbf16>
      %cst_103 = arith.constant dense<0.000000e+00> : vector<16x128xf32>
      %160 = tpu.matmul %158, %159, %cst_103 {dimension_numbers = #tpu.dot_dimension_numbers<[1], [0], [0], [1], [0, 0, 1, 1], [], []>} : vector<16x128xbf16>, vector<128x128xbf16>, vector<16x128xf32> -> vector<16x128xf32>
      %c0_104 = arith.constant 0 : index
      %c0_105 = arith.constant 0 : index
      %161 = vector.load %arg7[%c0_104, %c0_105] : memref<1x128xf32, #tpu.memory_space<vmem>>, vector<1x128xf32>
      %162 = vector.broadcast %161 : vector<1x128xf32> to vector<16x128xf32>
      %163 = arith.addf %160, %162 : vector<16x128xf32>
      %cst_106 = arith.constant 0.176776692 : f32
      %164 = vector.broadcast %cst_106 : f32 to vector<16x128xf32>
      %165 = arith.mulf %163, %164 : vector<16x128xf32>
      %166 = arith.truncf %165 : vector<16x128xf32> to vector<16x128xbf16>
      %c0_107 = arith.constant 0 : index
      %c0_108 = arith.constant 0 : index
      %167 = vector.load %arg15[%c0_107, %c0_108] : memref<16x128xbf16, #tpu.memory_space<vmem>>, vector<16x128xbf16>
      tpu.vector_store %arg15[%c0_107, %c0_108], %166 {strides = array<i32>} : memref<16x128xbf16, #tpu.memory_space<vmem>>, vector<16x128xbf16>,
      %cst_109 = arith.constant 0xFF800000 : f32
      %168 = vector.broadcast %cst_109 : f32 to vector<4x16x1xf32>
      %c0_110 = arith.constant 0 : index
      %c0_111 = arith.constant 0 : index
      %c0_112 = arith.constant 0 : index
      %169 = vector.load %arg16[%c0_110, %c0_111, %c0_112] : memref<4x16x1xf32, #tpu.memory_space<vmem>>, vector<4x16x1xf32>
      tpu.vector_store %arg16[%c0_110, %c0_111, %c0_112], %168 {strides = array<i32>} : memref<4x16x1xf32, #tpu.memory_space<vmem>>, vector<4x16x1xf32>,
      %cst_113 = arith.constant 0.000000e+00 : f32
      %170 = vector.broadcast %cst_113 : f32 to vector<4x16x1xf32>
      %c0_114 = arith.constant 0 : index
      %c0_115 = arith.constant 0 : index
      %c0_116 = arith.constant 0 : index
      %171 = vector.load %arg17[%c0_114, %c0_115, %c0_116] : memref<4x16x1xf32, #tpu.memory_space<vmem>>, vector<4x16x1xf32>
      tpu.vector_store %arg17[%c0_114, %c0_115, %c0_116], %170 {strides = array<i32>} : memref<4x16x1xf32, #tpu.memory_space<vmem>>, vector<4x16x1xf32>,
      %cst_117 = arith.constant 0.000000e+00 : f32
      %172 = vector.broadcast %cst_117 : f32 to vector<16x128xf32>
      %c0_118 = arith.constant 0 : index
      %c0_119 = arith.constant 0 : index
      %173 = vector.load %arg18[%c0_118, %c0_119] : memref<16x128xf32, #tpu.memory_space<vmem>>, vector<16x128xf32>
      tpu.vector_store %arg18[%c0_118, %c0_119], %172 {strides = array<i32>} : memref<16x128xf32, #tpu.memory_space<vmem>>, vector<16x128xf32>,
    } else {
    }
    %c0 = arith.constant 0 : index
    %c0_1 = arith.constant 0 : index
    %c0_2 = arith.constant 0 : index
    %3 = vector.load %arg4[%c0, %c0_1, %c0_2] : memref<1x16x128xf32, #tpu.memory_space<vmem>>, vector<1x16x128xf32>
    %4 = vector.shape_cast %3 : vector<1x16x128xf32> to vector<16x128xf32>
    %5 = arith.truncf %4 : vector<16x128xf32> to vector<16x128xbf16>
    %c0_3 = arith.constant 0 : index
    %c0_4 = arith.constant 0 : index
    %c0_5 = arith.constant 0 : index
    %6 = vector.load %arg5[%c0_3, %c0_4, %c0_5] : memref<1x16x128xf32, #tpu.memory_space<vmem>>, vector<1x16x128xf32>
    %7 = vector.shape_cast %6 : vector<1x16x128xf32> to vector<16x128xf32>
    %8 = arith.truncf %7 : vector<16x128xf32> to vector<16x128xbf16>
    %c0_6 = arith.constant 0 : index
    %c0_7 = arith.constant 0 : index
    %9 = vector.load %arg8[%c0_6, %c0_7] : memref<128x128xbf16, #tpu.memory_space<vmem>>, vector<128x128xbf16>
    %cst = arith.constant dense<0.000000e+00> : vector<16x128xf32>
    %10 = tpu.matmul %5, %9, %cst {dimension_numbers = #tpu.dot_dimension_numbers<[1], [0], [0], [1], [0, 0, 1, 1], [], []>} : vector<16x128xbf16>, vector<128x128xbf16>, vector<16x128xf32> -> vector<16x128xf32>
    %c0_8 = arith.constant 0 : index
    %c0_9 = arith.constant 0 : index
    %11 = vector.load %arg9[%c0_8, %c0_9] : memref<1x128xf32, #tpu.memory_space<vmem>>, vector<1x128xf32>
    %12 = vector.broadcast %11 : vector<1x128xf32> to vector<16x128xf32>
    %13 = arith.addf %10, %12 : vector<16x128xf32>
    %c0_10 = arith.constant 0 : index
    %c0_11 = arith.constant 0 : index
    %14 = vector.load %arg10[%c0_10, %c0_11] : memref<128x128xbf16, #tpu.memory_space<vmem>>, vector<128x128xbf16>
    %cst_12 = arith.constant dense<0.000000e+00> : vector<16x128xf32>
    %15 = tpu.matmul %8, %14, %cst_12 {dimension_numbers = #tpu.dot_dimension_numbers<[1], [0], [0], [1], [0, 0, 1, 1], [], []>} : vector<16x128xbf16>, vector<128x128xbf16>, vector<16x128xf32> -> vector<16x128xf32>
    %c0_13 = arith.constant 0 : index
    %c0_14 = arith.constant 0 : index
    %16 = vector.load %arg11[%c0_13, %c0_14] : memref<1x128xf32, #tpu.memory_space<vmem>>, vector<1x128xf32>
    %17 = vector.broadcast %16 : vector<1x128xf32> to vector<16x128xf32>
    %18 = arith.addf %15, %17 : vector<16x128xf32>
    %19 = arith.truncf %13 : vector<16x128xf32> to vector<16x128xbf16>
    %20 = arith.truncf %18 : vector<16x128xf32> to vector<16x128xbf16>
    %c0_15 = arith.constant 0 : index
    %c0_16 = arith.constant 0 : index
    %21 = vector.load %arg15[%c0_15, %c0_16] : memref<16x128xbf16, #tpu.memory_space<vmem>>, vector<16x32xbf16>
    %22 = vector.extract_strided_slice %19 {offsets = [0, 0], sizes = [16, 32], strides = [1, 1]} : vector<16x128xbf16> to vector<16x32xbf16>
    %23 = vector.extract_strided_slice %20 {offsets = [0, 0], sizes = [16, 32], strides = [1, 1]} : vector<16x128xbf16> to vector<16x32xbf16>
    %cst_17 = arith.constant dense<0.000000e+00> : vector<16x16xf32>
    %24 = tpu.matmul %21, %22, %cst_17 {dimension_numbers = #tpu.dot_dimension_numbers<[1], [1], [0], [0], [0, 0, 1, 0], [], []>} : vector<16x32xbf16>, vector<16x32xbf16>, vector<16x16xf32> -> vector<16x16xf32>
    %c0_18 = arith.constant 0 : index
    %c0_19 = arith.constant 0 : index
    %c0_20 = arith.constant 0 : index
    %25 = vector.load %arg16[%c0_18, %c0_19, %c0_20] : memref<4x16x1xf32, #tpu.memory_space<vmem>>, vector<1x16x1xf32>
    %26 = vector.shape_cast %25 : vector<1x16x1xf32> to vector<16x1xf32>
    %cst_21 = arith.constant dense<0xFF800000> : vector<16xf32>
    %27 = vector.multi_reduction <maximumf>, %24, %cst_21 [1] : vector<16x16xf32> to vector<16xf32>
    %28 = vector.shape_cast %27 : vector<16xf32> to vector<16x1xf32>
    %29 = arith.maximumf %26, %28 : vector<16x1xf32>
    %30 = arith.subf %26, %29 : vector<16x1xf32>
    %31 = math.exp %30 : vector<16x1xf32>
    %32 = vector.broadcast %29 : vector<16x1xf32> to vector<16x16xf32>
    %33 = arith.subf %24, %32 : vector<16x16xf32>
    %34 = math.exp %33 : vector<16x16xf32>
    %c0_22 = arith.constant 0 : index
    %c0_23 = arith.constant 0 : index
    %c0_24 = arith.constant 0 : index
    %35 = vector.load %arg17[%c0_22, %c0_23, %c0_24] : memref<4x16x1xf32, #tpu.memory_space<vmem>>, vector<1x16x1xf32>
    %36 = vector.shape_cast %35 : vector<1x16x1xf32> to vector<16x1xf32>
    %37 = arith.mulf %31, %36 : vector<16x1xf32>
    %cst_25 = arith.constant dense<0.000000e+00> : vector<16xf32>
    %38 = vector.multi_reduction <add>, %34, %cst_25 [1] : vector<16x16xf32> to vector<16xf32>
    %39 = vector.shape_cast %38 : vector<16xf32> to vector<16x1xf32>
    %40 = arith.addf %37, %39 : vector<16x1xf32>
    %c0_26 = arith.constant 0 : index
    %c0_27 = arith.constant 0 : index
    %c0_28 = arith.constant 0 : index
    %41 = vector.load %arg17[%c0_26, %c0_27, %c0_28] : memref<4x16x1xf32, #tpu.memory_space<vmem>>, vector<1x16x1xf32>
    %42 = vector.shape_cast %41 : vector<1x16x1xf32> to vector<16x1xf32>
    %43 = vector.shape_cast %40 : vector<16x1xf32> to vector<1x16x1xf32>
    tpu.vector_store %arg17[%c0_26, %c0_27, %c0_28], %43 {strides = array<i32>} : memref<4x16x1xf32, #tpu.memory_space<vmem>>, vector<1x16x1xf32>,
    %c0_29 = arith.constant 0 : index
    %c0_30 = arith.constant 0 : index
    %44 = vector.load %arg18[%c0_29, %c0_30] : memref<16x128xf32, #tpu.memory_space<vmem>>, vector<16x32xf32>
    %45 = vector.broadcast %31 : vector<16x1xf32> to vector<16x32xf32>
    %46 = arith.mulf %45, %44 : vector<16x32xf32>
    %47 = arith.truncf %34 : vector<16x16xf32> to vector<16x16xbf16>
    %cst_31 = arith.constant dense<0.000000e+00> : vector<16x32xf32>
    %48 = tpu.matmul %47, %23, %cst_31 {dimension_numbers = #tpu.dot_dimension_numbers<[1], [0], [0], [1], [0, 0, 1, 1], [], []>} : vector<16x16xbf16>, vector<16x32xbf16>, vector<16x32xf32> -> vector<16x32xf32>
    %49 = arith.addf %46, %48 : vector<16x32xf32>
    %c0_32 = arith.constant 0 : index
    %c0_33 = arith.constant 0 : index
    %50 = vector.load %arg18[%c0_32, %c0_33] : memref<16x128xf32, #tpu.memory_space<vmem>>, vector<16x32xf32>
    tpu.vector_store %arg18[%c0_32, %c0_33], %49 {strides = array<i32>} : memref<16x128xf32, #tpu.memory_space<vmem>>, vector<16x32xf32>,
    %c0_34 = arith.constant 0 : index
    %c0_35 = arith.constant 0 : index
    %c0_36 = arith.constant 0 : index
    %51 = vector.load %arg16[%c0_34, %c0_35, %c0_36] : memref<4x16x1xf32, #tpu.memory_space<vmem>>, vector<1x16x1xf32>
    %52 = vector.shape_cast %51 : vector<1x16x1xf32> to vector<16x1xf32>
    %53 = vector.shape_cast %29 : vector<16x1xf32> to vector<1x16x1xf32>
    tpu.vector_store %arg16[%c0_34, %c0_35, %c0_36], %53 {strides = array<i32>} : memref<4x16x1xf32, #tpu.memory_space<vmem>>, vector<1x16x1xf32>,
    %c0_37 = arith.constant 0 : index
    %c32 = arith.constant 32 : index
    %54 = vector.load %arg15[%c0_37, %c32] : memref<16x128xbf16, #tpu.memory_space<vmem>>, vector<16x32xbf16>
    %55 = vector.extract_strided_slice %19 {offsets = [0, 32], sizes = [16, 32], strides = [1, 1]} : vector<16x128xbf16> to vector<16x32xbf16>
    %56 = vector.extract_strided_slice %20 {offsets = [0, 32], sizes = [16, 32], strides = [1, 1]} : vector<16x128xbf16> to vector<16x32xbf16>
    %cst_38 = arith.constant dense<0.000000e+00> : vector<16x16xf32>
    %57 = tpu.matmul %54, %55, %cst_38 {dimension_numbers = #tpu.dot_dimension_numbers<[1], [1], [0], [0], [0, 0, 1, 0], [], []>} : vector<16x32xbf16>, vector<16x32xbf16>, vector<16x16xf32> -> vector<16x16xf32>
    %c1 = arith.constant 1 : index
    %c0_39 = arith.constant 0 : index
    %c0_40 = arith.constant 0 : index
    %58 = vector.load %arg16[%c1, %c0_39, %c0_40] : memref<4x16x1xf32, #tpu.memory_space<vmem>>, vector<1x16x1xf32>
    %59 = vector.shape_cast %58 : vector<1x16x1xf32> to vector<16x1xf32>
    %cst_41 = arith.constant dense<0xFF800000> : vector<16xf32>
    %60 = vector.multi_reduction <maximumf>, %57, %cst_41 [1] : vector<16x16xf32> to vector<16xf32>
    %61 = vector.shape_cast %60 : vector<16xf32> to vector<16x1xf32>
    %62 = arith.maximumf %59, %61 : vector<16x1xf32>
    %63 = arith.subf %59, %62 : vector<16x1xf32>
    %64 = math.exp %63 : vector<16x1xf32>
    %65 = vector.broadcast %62 : vector<16x1xf32> to vector<16x16xf32>
    %66 = arith.subf %57, %65 : vector<16x16xf32>
    %67 = math.exp %66 : vector<16x16xf32>
    %c1_42 = arith.constant 1 : index
    %c0_43 = arith.constant 0 : index
    %c0_44 = arith.constant 0 : index
    %68 = vector.load %arg17[%c1_42, %c0_43, %c0_44] : memref<4x16x1xf32, #tpu.memory_space<vmem>>, vector<1x16x1xf32>
    %69 = vector.shape_cast %68 : vector<1x16x1xf32> to vector<16x1xf32>
    %70 = arith.mulf %64, %69 : vector<16x1xf32>
    %cst_45 = arith.constant dense<0.000000e+00> : vector<16xf32>
    %71 = vector.multi_reduction <add>, %67, %cst_45 [1] : vector<16x16xf32> to vector<16xf32>
    %72 = vector.shape_cast %71 : vector<16xf32> to vector<16x1xf32>
    %73 = arith.addf %70, %72 : vector<16x1xf32>
    %c1_46 = arith.constant 1 : index
    %c0_47 = arith.constant 0 : index
    %c0_48 = arith.constant 0 : index
    %74 = vector.load %arg17[%c1_46, %c0_47, %c0_48] : memref<4x16x1xf32, #tpu.memory_space<vmem>>, vector<1x16x1xf32>
    %75 = vector.shape_cast %74 : vector<1x16x1xf32> to vector<16x1xf32>
    %76 = vector.shape_cast %73 : vector<16x1xf32> to vector<1x16x1xf32>
    tpu.vector_store %arg17[%c1_46, %c0_47, %c0_48], %76 {strides = array<i32>} : memref<4x16x1xf32, #tpu.memory_space<vmem>>, vector<1x16x1xf32>,
    %c0_49 = arith.constant 0 : index
    %c32_50 = arith.constant 32 : index
    %77 = vector.load %arg18[%c0_49, %c32_50] : memref<16x128xf32, #tpu.memory_space<vmem>>, vector<16x32xf32>
    %78 = vector.broadcast %64 : vector<16x1xf32> to vector<16x32xf32>
    %79 = arith.mulf %78, %77 : vector<16x32xf32>
    %80 = arith.truncf %67 : vector<16x16xf32> to vector<16x16xbf16>
    %cst_51 = arith.constant dense<0.000000e+00> : vector<16x32xf32>
    %81 = tpu.matmul %80, %56, %cst_51 {dimension_numbers = #tpu.dot_dimension_numbers<[1], [0], [0], [1], [0, 0, 1, 1], [], []>} : vector<16x16xbf16>, vector<16x32xbf16>, vector<16x32xf32> -> vector<16x32xf32>
    %82 = arith.addf %79, %81 : vector<16x32xf32>
    %c0_52 = arith.constant 0 : index
    %c32_53 = arith.constant 32 : index
    %83 = vector.load %arg18[%c0_52, %c32_53] : memref<16x128xf32, #tpu.memory_space<vmem>>, vector<16x32xf32>
    tpu.vector_store %arg18[%c0_52, %c32_53], %82 {strides = array<i32>} : memref<16x128xf32, #tpu.memory_space<vmem>>, vector<16x32xf32>,
    %c1_54 = arith.constant 1 : index
    %c0_55 = arith.constant 0 : index
    %c0_56 = arith.constant 0 : index
    %84 = vector.load %arg16[%c1_54, %c0_55, %c0_56] : memref<4x16x1xf32, #tpu.memory_space<vmem>>, vector<1x16x1xf32>
    %85 = vector.shape_cast %84 : vector<1x16x1xf32> to vector<16x1xf32>
    %86 = vector.shape_cast %62 : vector<16x1xf32> to vector<1x16x1xf32>
    tpu.vector_store %arg16[%c1_54, %c0_55, %c0_56], %86 {strides = array<i32>} : memref<4x16x1xf32, #tpu.memory_space<vmem>>, vector<1x16x1xf32>,
    %c0_57 = arith.constant 0 : index
    %c64 = arith.constant 64 : index
    %87 = vector.load %arg15[%c0_57, %c64] : memref<16x128xbf16, #tpu.memory_space<vmem>>, vector<16x32xbf16>
    %88 = vector.extract_strided_slice %19 {offsets = [0, 64], sizes = [16, 32], strides = [1, 1]} : vector<16x128xbf16> to vector<16x32xbf16>
    %89 = vector.extract_strided_slice %20 {offsets = [0, 64], sizes = [16, 32], strides = [1, 1]} : vector<16x128xbf16> to vector<16x32xbf16>
    %cst_58 = arith.constant dense<0.000000e+00> : vector<16x16xf32>
    %90 = tpu.matmul %87, %88, %cst_58 {dimension_numbers = #tpu.dot_dimension_numbers<[1], [1], [0], [0], [0, 0, 1, 0], [], []>} : vector<16x32xbf16>, vector<16x32xbf16>, vector<16x16xf32> -> vector<16x16xf32>
    %c2 = arith.constant 2 : index
    %c0_59 = arith.constant 0 : index
    %c0_60 = arith.constant 0 : index
    %91 = vector.load %arg16[%c2, %c0_59, %c0_60] : memref<4x16x1xf32, #tpu.memory_space<vmem>>, vector<1x16x1xf32>
    %92 = vector.shape_cast %91 : vector<1x16x1xf32> to vector<16x1xf32>
    %cst_61 = arith.constant dense<0xFF800000> : vector<16xf32>
    %93 = vector.multi_reduction <maximumf>, %90, %cst_61 [1] : vector<16x16xf32> to vector<16xf32>
    %94 = vector.shape_cast %93 : vector<16xf32> to vector<16x1xf32>
    %95 = arith.maximumf %92, %94 : vector<16x1xf32>
    %96 = arith.subf %92, %95 : vector<16x1xf32>
    %97 = math.exp %96 : vector<16x1xf32>
    %98 = vector.broadcast %95 : vector<16x1xf32> to vector<16x16xf32>
    %99 = arith.subf %90, %98 : vector<16x16xf32>
    %100 = math.exp %99 : vector<16x16xf32>
    %c2_62 = arith.constant 2 : index
    %c0_63 = arith.constant 0 : index
    %c0_64 = arith.constant 0 : index
    %101 = vector.load %arg17[%c2_62, %c0_63, %c0_64] : memref<4x16x1xf32, #tpu.memory_space<vmem>>, vector<1x16x1xf32>
    %102 = vector.shape_cast %101 : vector<1x16x1xf32> to vector<16x1xf32>
    %103 = arith.mulf %97, %102 : vector<16x1xf32>
    %cst_65 = arith.constant dense<0.000000e+00> : vector<16xf32>
    %104 = vector.multi_reduction <add>, %100, %cst_65 [1] : vector<16x16xf32> to vector<16xf32>
    %105 = vector.shape_cast %104 : vector<16xf32> to vector<16x1xf32>
    %106 = arith.addf %103, %105 : vector<16x1xf32>
    %c2_66 = arith.constant 2 : index
    %c0_67 = arith.constant 0 : index
    %c0_68 = arith.constant 0 : index
    %107 = vector.load %arg17[%c2_66, %c0_67, %c0_68] : memref<4x16x1xf32, #tpu.memory_space<vmem>>, vector<1x16x1xf32>
    %108 = vector.shape_cast %107 : vector<1x16x1xf32> to vector<16x1xf32>
    %109 = vector.shape_cast %106 : vector<16x1xf32> to vector<1x16x1xf32>
    tpu.vector_store %arg17[%c2_66, %c0_67, %c0_68], %109 {strides = array<i32>} : memref<4x16x1xf32, #tpu.memory_space<vmem>>, vector<1x16x1xf32>,
    %c0_69 = arith.constant 0 : index
    %c64_70 = arith.constant 64 : index
    %110 = vector.load %arg18[%c0_69, %c64_70] : memref<16x128xf32, #tpu.memory_space<vmem>>, vector<16x32xf32>
    %111 = vector.broadcast %97 : vector<16x1xf32> to vector<16x32xf32>
    %112 = arith.mulf %111, %110 : vector<16x32xf32>
    %113 = arith.truncf %100 : vector<16x16xf32> to vector<16x16xbf16>
    %cst_71 = arith.constant dense<0.000000e+00> : vector<16x32xf32>
    %114 = tpu.matmul %113, %89, %cst_71 {dimension_numbers = #tpu.dot_dimension_numbers<[1], [0], [0], [1], [0, 0, 1, 1], [], []>} : vector<16x16xbf16>, vector<16x32xbf16>, vector<16x32xf32> -> vector<16x32xf32>
    %115 = arith.addf %112, %114 : vector<16x32xf32>
    %c0_72 = arith.constant 0 : index
    %c64_73 = arith.constant 64 : index
    %116 = vector.load %arg18[%c0_72, %c64_73] : memref<16x128xf32, #tpu.memory_space<vmem>>, vector<16x32xf32>
    tpu.vector_store %arg18[%c0_72, %c64_73], %115 {strides = array<i32>} : memref<16x128xf32, #tpu.memory_space<vmem>>, vector<16x32xf32>,
    %c2_74 = arith.constant 2 : index
    %c0_75 = arith.constant 0 : index
    %c0_76 = arith.constant 0 : index
    %117 = vector.load %arg16[%c2_74, %c0_75, %c0_76] : memref<4x16x1xf32, #tpu.memory_space<vmem>>, vector<1x16x1xf32>
    %118 = vector.shape_cast %117 : vector<1x16x1xf32> to vector<16x1xf32>
    %119 = vector.shape_cast %95 : vector<16x1xf32> to vector<1x16x1xf32>
    tpu.vector_store %arg16[%c2_74, %c0_75, %c0_76], %119 {strides = array<i32>} : memref<4x16x1xf32, #tpu.memory_space<vmem>>, vector<1x16x1xf32>,
    %c0_77 = arith.constant 0 : index
    %c96 = arith.constant 96 : index
    %120 = vector.load %arg15[%c0_77, %c96] : memref<16x128xbf16, #tpu.memory_space<vmem>>, vector<16x32xbf16>
    %121 = vector.extract_strided_slice %19 {offsets = [0, 96], sizes = [16, 32], strides = [1, 1]} : vector<16x128xbf16> to vector<16x32xbf16>
    %122 = vector.extract_strided_slice %20 {offsets = [0, 96], sizes = [16, 32], strides = [1, 1]} : vector<16x128xbf16> to vector<16x32xbf16>
    %cst_78 = arith.constant dense<0.000000e+00> : vector<16x16xf32>
    %123 = tpu.matmul %120, %121, %cst_78 {dimension_numbers = #tpu.dot_dimension_numbers<[1], [1], [0], [0], [0, 0, 1, 0], [], []>} : vector<16x32xbf16>, vector<16x32xbf16>, vector<16x16xf32> -> vector<16x16xf32>
    %c3 = arith.constant 3 : index
    %c0_79 = arith.constant 0 : index
    %c0_80 = arith.constant 0 : index
    %124 = vector.load %arg16[%c3, %c0_79, %c0_80] : memref<4x16x1xf32, #tpu.memory_space<vmem>>, vector<1x16x1xf32>
    %125 = vector.shape_cast %124 : vector<1x16x1xf32> to vector<16x1xf32>
    %cst_81 = arith.constant dense<0xFF800000> : vector<16xf32>
    %126 = vector.multi_reduction <maximumf>, %123, %cst_81 [1] : vector<16x16xf32> to vector<16xf32>
    %127 = vector.shape_cast %126 : vector<16xf32> to vector<16x1xf32>
    %128 = arith.maximumf %125, %127 : vector<16x1xf32>
    %129 = arith.subf %125, %128 : vector<16x1xf32>
    %130 = math.exp %129 : vector<16x1xf32>
    %131 = vector.broadcast %128 : vector<16x1xf32> to vector<16x16xf32>
    %132 = arith.subf %123, %131 : vector<16x16xf32>
    %133 = math.exp %132 : vector<16x16xf32>
    %c3_82 = arith.constant 3 : index
    %c0_83 = arith.constant 0 : index
    %c0_84 = arith.constant 0 : index
    %134 = vector.load %arg17[%c3_82, %c0_83, %c0_84] : memref<4x16x1xf32, #tpu.memory_space<vmem>>, vector<1x16x1xf32>
    %135 = vector.shape_cast %134 : vector<1x16x1xf32> to vector<16x1xf32>
    %136 = arith.mulf %130, %135 : vector<16x1xf32>
    %cst_85 = arith.constant dense<0.000000e+00> : vector<16xf32>
    %137 = vector.multi_reduction <add>, %133, %cst_85 [1] : vector<16x16xf32> to vector<16xf32>
    %138 = vector.shape_cast %137 : vector<16xf32> to vector<16x1xf32>
    %139 = arith.addf %136, %138 : vector<16x1xf32>
    %c3_86 = arith.constant 3 : index
    %c0_87 = arith.constant 0 : index
    %c0_88 = arith.constant 0 : index
    %140 = vector.load %arg17[%c3_86, %c0_87, %c0_88] : memref<4x16x1xf32, #tpu.memory_space<vmem>>, vector<1x16x1xf32>
    %141 = vector.shape_cast %140 : vector<1x16x1xf32> to vector<16x1xf32>
    %142 = vector.shape_cast %139 : vector<16x1xf32> to vector<1x16x1xf32>
    tpu.vector_store %arg17[%c3_86, %c0_87, %c0_88], %142 {strides = array<i32>} : memref<4x16x1xf32, #tpu.memory_space<vmem>>, vector<1x16x1xf32>,
    %c0_89 = arith.constant 0 : index
    %c96_90 = arith.constant 96 : index
    %143 = vector.load %arg18[%c0_89, %c96_90] : memref<16x128xf32, #tpu.memory_space<vmem>>, vector<16x32xf32>
    %144 = vector.broadcast %130 : vector<16x1xf32> to vector<16x32xf32>
    %145 = arith.mulf %144, %143 : vector<16x32xf32>
    %146 = arith.truncf %133 : vector<16x16xf32> to vector<16x16xbf16>
    %cst_91 = arith.constant dense<0.000000e+00> : vector<16x32xf32>
    %147 = tpu.matmul %146, %122, %cst_91 {dimension_numbers = #tpu.dot_dimension_numbers<[1], [0], [0], [1], [0, 0, 1, 1], [], []>} : vector<16x16xbf16>, vector<16x32xbf16>, vector<16x32xf32> -> vector<16x32xf32>
    %148 = arith.addf %145, %147 : vector<16x32xf32>
    %c0_92 = arith.constant 0 : index
    %c96_93 = arith.constant 96 : index
    %149 = vector.load %arg18[%c0_92, %c96_93] : memref<16x128xf32, #tpu.memory_space<vmem>>, vector<16x32xf32>
    tpu.vector_store %arg18[%c0_92, %c96_93], %148 {strides = array<i32>} : memref<16x128xf32, #tpu.memory_space<vmem>>, vector<16x32xf32>,
    %c3_94 = arith.constant 3 : index
    %c0_95 = arith.constant 0 : index
    %c0_96 = arith.constant 0 : index
    %150 = vector.load %arg16[%c3_94, %c0_95, %c0_96] : memref<4x16x1xf32, #tpu.memory_space<vmem>>, vector<1x16x1xf32>
    %151 = vector.shape_cast %150 : vector<1x16x1xf32> to vector<16x1xf32>
    %152 = vector.shape_cast %128 : vector<16x1xf32> to vector<1x16x1xf32>
    tpu.vector_store %arg16[%c3_94, %c0_95, %c0_96], %152 {strides = array<i32>} : memref<4x16x1xf32, #tpu.memory_space<vmem>>, vector<1x16x1xf32>,
    %c1_i32 = arith.constant 1 : i32
    %153 = arith.cmpi eq, %arg2, %c1_i32 : i32
    %154 = arith.extui %153 : i1 to i32
    %c0_i32_97 = arith.constant 0 : i32
    %155 = arith.cmpi ne, %154, %c0_i32_97 : i32
    scf.if %155 {
      %c0_98 = arith.constant 0 : index
      %c0_99 = arith.constant 0 : index
      %c0_100 = arith.constant 0 : index
      %156 = vector.load %arg17[%c0_98, %c0_99, %c0_100] : memref<4x16x1xf32, #tpu.memory_space<vmem>>, vector<1x16x1xf32>
      %157 = vector.shape_cast %156 : vector<1x16x1xf32> to vector<16x1xf32>
      %158 = tpu.reciprocal %157 {approx = true} : vector<16x1xf32> -> vector<16x1xf32>
      %c0_101 = arith.constant 0 : index
      %c0_102 = arith.constant 0 : index
      %159 = vector.load %arg18[%c0_101, %c0_102] : memref<16x128xf32, #tpu.memory_space<vmem>>, vector<16x32xf32>
      %160 = vector.broadcast %158 : vector<16x1xf32> to vector<16x32xf32>
      %161 = arith.mulf %159, %160 : vector<16x32xf32>
      %c0_103 = arith.constant 0 : index
      %c0_104 = arith.constant 0 : index
      %162 = vector.load %arg18[%c0_103, %c0_104] : memref<16x128xf32, #tpu.memory_space<vmem>>, vector<16x32xf32>
      tpu.vector_store %arg18[%c0_103, %c0_104], %161 {strides = array<i32>} : memref<16x128xf32, #tpu.memory_space<vmem>>, vector<16x32xf32>,
      %c1_105 = arith.constant 1 : index
      %c0_106 = arith.constant 0 : index
      %c0_107 = arith.constant 0 : index
      %163 = vector.load %arg17[%c1_105, %c0_106, %c0_107] : memref<4x16x1xf32, #tpu.memory_space<vmem>>, vector<1x16x1xf32>
      %164 = vector.shape_cast %163 : vector<1x16x1xf32> to vector<16x1xf32>
      %165 = tpu.reciprocal %164 {approx = true} : vector<16x1xf32> -> vector<16x1xf32>
      %c0_108 = arith.constant 0 : index
      %c32_109 = arith.constant 32 : index
      %166 = vector.load %arg18[%c0_108, %c32_109] : memref<16x128xf32, #tpu.memory_space<vmem>>, vector<16x32xf32>
      %167 = vector.broadcast %165 : vector<16x1xf32> to vector<16x32xf32>
      %168 = arith.mulf %166, %167 : vector<16x32xf32>
      %c0_110 = arith.constant 0 : index
      %c32_111 = arith.constant 32 : index
      %169 = vector.load %arg18[%c0_110, %c32_111] : memref<16x128xf32, #tpu.memory_space<vmem>>, vector<16x32xf32>
      tpu.vector_store %arg18[%c0_110, %c32_111], %168 {strides = array<i32>} : memref<16x128xf32, #tpu.memory_space<vmem>>, vector<16x32xf32>,
      %c2_112 = arith.constant 2 : index
      %c0_113 = arith.constant 0 : index
      %c0_114 = arith.constant 0 : index
      %170 = vector.load %arg17[%c2_112, %c0_113, %c0_114] : memref<4x16x1xf32, #tpu.memory_space<vmem>>, vector<1x16x1xf32>
      %171 = vector.shape_cast %170 : vector<1x16x1xf32> to vector<16x1xf32>
      %172 = tpu.reciprocal %171 {approx = true} : vector<16x1xf32> -> vector<16x1xf32>
      %c0_115 = arith.constant 0 : index
      %c64_116 = arith.constant 64 : index
      %173 = vector.load %arg18[%c0_115, %c64_116] : memref<16x128xf32, #tpu.memory_space<vmem>>, vector<16x32xf32>
      %174 = vector.broadcast %172 : vector<16x1xf32> to vector<16x32xf32>
      %175 = arith.mulf %173, %174 : vector<16x32xf32>
      %c0_117 = arith.constant 0 : index
      %c64_118 = arith.constant 64 : index
      %176 = vector.load %arg18[%c0_117, %c64_118] : memref<16x128xf32, #tpu.memory_space<vmem>>, vector<16x32xf32>
      tpu.vector_store %arg18[%c0_117, %c64_118], %175 {strides = array<i32>} : memref<16x128xf32, #tpu.memory_space<vmem>>, vector<16x32xf32>,
      %c3_119 = arith.constant 3 : index
      %c0_120 = arith.constant 0 : index
      %c0_121 = arith.constant 0 : index
      %177 = vector.load %arg17[%c3_119, %c0_120, %c0_121] : memref<4x16x1xf32, #tpu.memory_space<vmem>>, vector<1x16x1xf32>
      %178 = vector.shape_cast %177 : vector<1x16x1xf32> to vector<16x1xf32>
      %179 = tpu.reciprocal %178 {approx = true} : vector<16x1xf32> -> vector<16x1xf32>
      %c0_122 = arith.constant 0 : index
      %c96_123 = arith.constant 96 : index
      %180 = vector.load %arg18[%c0_122, %c96_123] : memref<16x128xf32, #tpu.memory_space<vmem>>, vector<16x32xf32>
      %181 = vector.broadcast %179 : vector<16x1xf32> to vector<16x32xf32>
      %182 = arith.mulf %180, %181 : vector<16x32xf32>
      %c0_124 = arith.constant 0 : index
      %c96_125 = arith.constant 96 : index
      %183 = vector.load %arg18[%c0_124, %c96_125] : memref<16x128xf32, #tpu.memory_space<vmem>>, vector<16x32xf32>
      tpu.vector_store %arg18[%c0_124, %c96_125], %182 {strides = array<i32>} : memref<16x128xf32, #tpu.memory_space<vmem>>, vector<16x32xf32>,
      %c0_126 = arith.constant 0 : index
      %c0_127 = arith.constant 0 : index
      %184 = vector.load %arg18[%c0_126, %c0_127] : memref<16x128xf32, #tpu.memory_space<vmem>>, vector<16x128xf32>
      %185 = arith.truncf %184 : vector<16x128xf32> to vector<16x128xbf16>
      %c0_128 = arith.constant 0 : index
      %c0_129 = arith.constant 0 : index
      %186 = vector.load %arg12[%c0_128, %c0_129] : memref<128x128xbf16, #tpu.memory_space<vmem>>, vector<128x128xbf16>
      %cst_130 = arith.constant dense<0.000000e+00> : vector<16x128xf32>
      %187 = tpu.matmul %185, %186, %cst_130 {dimension_numbers = #tpu.dot_dimension_numbers<[1], [0], [0], [1], [0, 0, 1, 1], [], []>} : vector<16x128xbf16>, vector<128x128xbf16>, vector<16x128xf32> -> vector<16x128xf32>
      %c0_131 = arith.constant 0 : index
      %c0_132 = arith.constant 0 : index
      %188 = vector.load %arg13[%c0_131, %c0_132] : memref<1x128xf32, #tpu.memory_space<vmem>>, vector<1x128xf32>
      %189 = vector.broadcast %188 : vector<1x128xf32> to vector<16x128xf32>
      %190 = arith.addf %187, %189 : vector<16x128xf32>
      %c0_133 = arith.constant 0 : index
      %c0_134 = arith.constant 0 : index
      %c0_135 = arith.constant 0 : index
      %191 = vector.load %arg14[%c0_133, %c0_134, %c0_135] : memref<1x16x128xf32, #tpu.memory_space<vmem>>, vector<1x16x128xf32>
      %192 = vector.shape_cast %191 : vector<1x16x128xf32> to vector<16x128xf32>
      %193 = vector.shape_cast %190 : vector<16x128xf32> to vector<1x16x128xf32>
      tpu.vector_store %arg14[%c0_133, %c0_134, %c0_135], %193 {strides = array<i32>} : memref<1x16x128xf32, #tpu.memory_space<vmem>>, vector<1x16x128xf32>,
    } else {
    }
    return
  }
  func.func @transform_0(%arg0: i32, %arg1: i32, %arg2: i32) -> (i32, i32, i32) {
    %c0_i32 = arith.constant 0 : i32
    %c0_i32_0 = arith.constant 0 : i32
    return %arg0, %arg1, %c0_i32 : i32, i32, i32
  }
  func.func @transform_1(%arg0: i32, %arg1: i32, %arg2: i32) -> (i32, i32, i32) {
    %c0_i32 = arith.constant 0 : i32
    %c0_i32_0 = arith.constant 0 : i32
    return %arg0, %arg2, %c0_i32 : i32, i32, i32
  }
  func.func @transform_2(%arg0: i32, %arg1: i32, %arg2: i32) -> (i32, i32, i32) {
    %c0_i32 = arith.constant 0 : i32
    %c0_i32_0 = arith.constant 0 : i32
    return %arg0, %arg2, %c0_i32 : i32, i32, i32
  }
  func.func @transform_3(%arg0: i32, %arg1: i32, %arg2: i32) -> (i32, i32) {
    %c0_i32 = arith.constant 0 : i32
    %c0_i32_0 = arith.constant 0 : i32
    %c0_i32_1 = arith.constant 0 : i32
    return %c0_i32, %c0_i32_0 : i32, i32
  }
  func.func @transform_4(%arg0: i32, %arg1: i32, %arg2: i32) -> (i32, i32) {
    %c0_i32 = arith.constant 0 : i32
    %c0_i32_0 = arith.constant 0 : i32
    %c0_i32_1 = arith.constant 0 : i32
    return %c0_i32, %c0_i32_0 : i32, i32
  }
  func.func @transform_5(%arg0: i32, %arg1: i32, %arg2: i32) -> (i32, i32) {
    %c0_i32 = arith.constant 0 : i32
    %c0_i32_0 = arith.constant 0 : i32
    %c0_i32_1 = arith.constant 0 : i32
    return %c0_i32, %c0_i32_0 : i32, i32
  }
  func.func @transform_6(%arg0: i32, %arg1: i32, %arg2: i32) -> (i32, i32) {
    %c0_i32 = arith.constant 0 : i32
    %c0_i32_0 = arith.constant 0 : i32
    %c0_i32_1 = arith.constant 0 : i32
    return %c0_i32, %c0_i32_0 : i32, i32
  }
  func.func @transform_7(%arg0: i32, %arg1: i32, %arg2: i32) -> (i32, i32) {
    %c0_i32 = arith.constant 0 : i32
    %c0_i32_0 = arith.constant 0 : i32
    %c0_i32_1 = arith.constant 0 : i32
    return %c0_i32, %c0_i32_0 : i32, i32
  }
  func.func @transform_8(%arg0: i32, %arg1: i32, %arg2: i32) -> (i32, i32) {
    %c0_i32 = arith.constant 0 : i32
    %c0_i32_0 = arith.constant 0 : i32
    %c0_i32_1 = arith.constant 0 : i32
    return %c0_i32, %c0_i32_0 : i32, i32
  }
  func.func @transform_9(%arg0: i32, %arg1: i32, %arg2: i32) -> (i32, i32) {
    %c0_i32 = arith.constant 0 : i32
    %c0_i32_0 = arith.constant 0 : i32
    %c0_i32_1 = arith.constant 0 : i32
    return %c0_i32, %c0_i32_0 : i32, i32
  }
  func.func @transform_10(%arg0: i32, %arg1: i32, %arg2: i32) -> (i32, i32) {
    %c0_i32 = arith.constant 0 : i32
    %c0_i32_0 = arith.constant 0 : i32
    %c0_i32_1 = arith.constant 0 : i32
    return %c0_i32, %c0_i32_0 : i32, i32
  }
  func.func @transform_11(%arg0: i32, %arg1: i32, %arg2: i32) -> (i32, i32, i32) {
    %c0_i32 = arith.constant 0 : i32
    %c0_i32_0 = arith.constant 0 : i32
    return %arg0, %arg1, %c0_i32 : i32, i32, i32
  }
}

</mosaic_0001>

<llo_original>
// kernel: tpu_custom_call.1
$region0: #{tpu_custom_call.1}
  #allocation0 [shape = 'u32[]', space=smem, size = 0x4, offset = 0x4, fixed_abs, tag = 'smem constant byte address 0x4 - core index']
  #allocation1 [shape = 'u32[144,128]{1,0:T(1,128)}', space=vmem, size = 0x12000, scoped, tag = 'internal scratch']
  #allocation2 [shape = 'bf16[16,128]{1,0:T(16,128)(2,1)}', space=vmem, size = 0x1000, scoped, tag = 'scratch operand']
  #allocation3 [shape = 'f32[4,16,1]{2,1,0:T(8,128)}', space=vmem, size = 0x8000, scoped, tag = 'scratch operand']
  #allocation4 [shape = 'f32[4,16,1]{2,1,0:T(8,128)}', space=vmem, size = 0x8000, scoped, tag = 'scratch operand']
  #allocation5 [shape = 'f32[16,128]{1,0:T(8,128)}', space=vmem, size = 0x2000, scoped, tag = 'scratch operand']
  %s0 = inlined_call_operand.hbm [shape: f32[2,32,128], index: 0, kind: input, shape index: {}]
  %s1 = inlined_call_operand.hbm [shape: f32[2,32,128], index: 1, kind: input, shape index: {}]
  %s2 = inlined_call_operand.hbm [shape: f32[2,32,128], index: 2, kind: input, shape index: {}]
  %s3 = inlined_call_operand.hbm [shape: bf16[128,128], index: 3, kind: input, shape index: {}]
  %s4 = inlined_call_operand.vmem [shape: f32[1,128], index: 4, kind: input, shape index: {}]
  %s5 = inlined_call_operand.hbm [shape: bf16[128,128], index: 5, kind: input, shape index: {}]
  %s6 = inlined_call_operand.vmem [shape: f32[1,128], index: 6, kind: input, shape index: {}]
  %s7 = inlined_call_operand.hbm [shape: bf16[128,128], index: 7, kind: input, shape index: {}]
  %s8 = inlined_call_operand.vmem [shape: f32[1,128], index: 8, kind: input, shape index: {}]
  %s9 = inlined_call_operand.hbm [shape: bf16[128,128], index: 9, kind: input, shape index: {}]
  %s10 = inlined_call_operand.vmem [shape: f32[1,128], index: 10, kind: input, shape index: {}]
  %s11 = inlined_call_operand.hbm [shape: f32[2,32,128], index: 11, kind: output, shape index: {}]
  %s12 = sld [smem:[#allocation0]]
  $region113: #{tpu_custom_call.1} parent=0
    _
  %s14 = ssub.s32 1, %s12
  %s15 = scalar_select 0, %s14, %s12
  $region1: #{tpu_custom_call.1} parent=0
    #allocation6 [shape = 'u8[16384]{0}', space=vmem, size = 0x4000, scoped, tag = 'input window, operand 0']
    #allocation7 [shape = 's32[2]{0}', space=sflag, size = 0x8, scoped, tag = 'scoped memory for tpu_custom_call.1']
    #allocation8 [shape = 's32[2]{0}', space=sflag, size = 0x8, scoped, tag = 'scoped memory for tpu_custom_call.1']
    #allocation9 [shape = 'u8[16384]{0}', space=vmem, size = 0x4000, scoped, tag = 'input window, operand 1']
    #allocation10 [shape = 's32[2]{0}', space=sflag, size = 0x8, scoped, tag = 'scoped memory for tpu_custom_call.1']
    #allocation11 [shape = 'u8[16384]{0}', space=vmem, size = 0x4000, scoped, tag = 'input window, operand 2']
    #allocation12 [shape = 'u8[32768]{0}', space=vmem, size = 0x8000, scoped, tag = 'input window, operand 3, single buffered']
    #allocation13 [shape = 's32[1]{0}', space=sflag, size = 0x4, scoped, tag = 'scoped memory for tpu_custom_call.1']
    #allocation14 [shape = 'u8[32768]{0}', space=vmem, size = 0x8000, scoped, tag = 'input window, operand 5, single buffered']
    #allocation15 [shape = 'u8[32768]{0}', space=vmem, size = 0x8000, scoped, tag = 'input window, operand 7, single buffered']
    #allocation16 [shape = 's32[1]{0}', space=sflag, size = 0x4, scoped, tag = 'scoped memory for tpu_custom_call.1']
    #allocation17 [shape = 'u8[32768]{0}', space=vmem, size = 0x8000, scoped, tag = 'input window, operand 9, single buffered']
    #allocation18 [shape = 'u8[16384]{0}', space=vmem, size = 0x4000, scoped, tag = 'output window, operand 0']
    %16 = vsyncpa [#allocation7], 0
    %s17 = scalar_lea.sflag [#allocation7], 1
    %18 = vsyncpa %s17, 0
    %19 = vsyncpa [#allocation10], 0
    %s20 = scalar_lea.sflag [#allocation10], 1
    %21 = vsyncpa %s20, 0
    %22 = vsyncpa [#allocation13], 0
    %23 = vsyncpa [#allocation16], 0
    %24 = vsyncpa [#allocation8], 0
    %s25 = scalar_lea.sflag [#allocation8], 1
    %26 = vsyncpa %s25, 0
    loop: start=0, step=1, limit=10
    $region2: #{tpu_custom_call.1} parent=1 // loop_pre_header
      _
    $region3: #{tpu_custom_call.1} parent=1 // loop_header
      %s28 = sphi 0, %s32
      %p29 = scmp.ge.s32.totalorder %s28, 10
      %s35 = sphi 0, %s54
      %s36 = sphi 0, %s50
      %s37 = sphi 0, %s46
      %s38 = sphi 0, %s35
      %s39 = sphi 0, %s36
      %s40 = sphi 0, %s37
      %s41 = sphi 0, %s38
      %s42 = sphi 0, %s39
      %s43 = sphi 0, %s40
      %s59 = sphi 0, %s61
      %s62 = sphi 0, %s59
      %s63 = sphi 0, %s62
      %s79 = sphi 0, %s63
      %s87 = sphi 0, %s89
      %s90 = sphi 0, %s87
      %s91 = sphi 0, %s90
      %s107 = sphi 0, %s91
      %s115 = sphi 0, %s117
      %s118 = sphi 0, %s115
      %s119 = sphi 0, %s118
      %s135 = sphi 0, %s119
      %s139 = sphi 0, %s139
      %s141 = sphi 0, %s139
      %s142 = sphi 0, %s141
      %s156 = sphi 0, %s142
      %s160 = sphi 0, %s160
      %s162 = sphi 0, %s160
      %s163 = sphi 0, %s162
      %s177 = sphi 0, %s163
      %s181 = sphi 0, %s181
      %s183 = sphi 0, %s181
      %s184 = sphi 0, %s183
      %s198 = sphi 0, %s184
      %s202 = sphi 0, %s202
      %s204 = sphi 0, %s202
      %s205 = sphi 0, %s204
      %s219 = sphi 0, %s205
      %s223 = sphi 0, %s223
      %s225 = sphi 0, %s223
      %s226 = sphi 0, %s225
      %s240 = sphi 0, %s226
      %s244 = sphi 0, %s244
      %s246 = sphi 0, %s244
      %s247 = sphi 0, %s246
      %s261 = sphi 0, %s247
      %s265 = sphi 0, %s265
      %s267 = sphi 0, %s265
      %s268 = sphi 0, %s267
      %s282 = sphi 0, %s268
      %s286 = sphi 0, %s286
      %s288 = sphi 0, %s286
      %s289 = sphi 0, %s288
      %s303 = sphi 0, %s289
      %s311 = sphi 0, %s313
      %s314 = sphi 0, %s311
      %s315 = sphi 0, %s314
      %s331 = sphi 0, %s315
    $region4: #{tpu_custom_call.1} parent=1 // loop_header_branch
      %31 = sbr.rel (%p29) target = $region8
    $region5: #{tpu_custom_call.1} parent=1 // loop_body
      %s33 = ssub.s32 %s28, 1
      %s34 = ssub.s32 %s28, 2
      %s44 = sadd.s32 1, %s37
      %p45 = scmp.ge.s32.totalorder %s44, 2
      %s46 = scalar_select %p45, 0, %s44
      %s47 = sadd.s32 1, %s36
      %s48 = scalar_select %p45, %s47, %s36
      %p49 = scmp.ge.s32.totalorder %s48, 2
      %s50 = scalar_select %p49, 0, %s48
      %s51 = sadd.s32 1, %s35
      %s52 = scalar_select %p49, %s51, %s35
      %p53 = scmp.ge.s32.totalorder %s52, 2
      %s54 = scalar_select %p53, 0, %s52
      %s55 = ssub.s32 %s35, %s54
      %s56 = ssub.s32 %s36, %s50
      %s57 = sor.u32 %s55, %s56
      %p58 = scmp.eq.s32.totalorder %s57, 0
      %s60 = sadd.s32 %s59, 1
      %s61 = scalar_select %p58, %s59, %s60
      %p64 = pneg %p58
      %p65 = scmp.eq.s32.totalorder %s28, 7
      %p66 = por %p64, %p65
      %p67 = scmp.ne.s32.totalorder %s59, %s62
      %p68 = scmp.eq.s32.totalorder %s28, 0
      %p69 = por %p67, %p68
      %p70 = scmp.ne.s32.totalorder %s59, %s62
      %p71 = scmp.eq.s32.totalorder %s33, 7
      %p72 = por %p70, %p71
      %p73 = scmp.ne.s32.totalorder %s62, %s63
      %p74 = scmp.eq.s32.totalorder %s33, 0
      %p75 = por %p73, %p74
      %p76 = scmp.ne.s32.totalorder %s62, %s63
      %p77 = scmp.eq.s32.totalorder %s34, 7
      %p78 = por %p76, %p77
      %p80 = scmp.ne.s32.totalorder %s63, %s79
      %p81 = scmp.eq.s32.totalorder %s34, 0
      %p82 = por %p80, %p81
      %s83 = ssub.s32 %s35, %s54
      %s84 = ssub.s32 %s37, %s46
      %s85 = sor.u32 %s83, %s84
      %p86 = scmp.eq.s32.totalorder %s85, 0
      %s88 = sadd.s32 %s87, 1
      %s89 = scalar_select %p86, %s87, %s88
      %p92 = pneg %p86
      %p93 = scmp.eq.s32.totalorder %s28, 7
      %p94 = por %p92, %p93
      %p95 = scmp.ne.s32.totalorder %s87, %s90
      %p96 = scmp.eq.s32.totalorder %s28, 0
      %p97 = por %p95, %p96
      %p98 = scmp.ne.s32.totalorder %s87, %s90
      %p99 = scmp.eq.s32.totalorder %s33, 7
      %p100 = por %p98, %p99
      %p101 = scmp.ne.s32.totalorder %s90, %s91
      %p102 = scmp.eq.s32.totalorder %s33, 0
      %p103 = por %p101, %p102
      %p104 = scmp.ne.s32.totalorder %s90, %s91
      %p105 = scmp.eq.s32.totalorder %s34, 7
      %p106 = por %p104, %p105
      %p108 = scmp.ne.s32.totalorder %s91, %s107
      %p109 = scmp.eq.s32.totalorder %s34, 0
      %p110 = por %p108, %p109
      %s111 = ssub.s32 %s35, %s54
      %s112 = ssub.s32 %s37, %s46
      %s113 = sor.u32 %s111, %s112
      %p114 = scmp.eq.s32.totalorder %s113, 0
      %s116 = sadd.s32 %s115, 1
      %s117 = scalar_select %p114, %s115, %s116
      %p120 = pneg %p114
      %p121 = scmp.eq.s32.totalorder %s28, 7
      %p122 = por %p120, %p121
      %p123 = scmp.ne.s32.totalorder %s115, %s118
      %p124 = scmp.eq.s32.totalorder %s28, 0
      %p125 = por %p123, %p124
      %p126 = scmp.ne.s32.totalorder %s115, %s118
      %p127 = scmp.eq.s32.totalorder %s33, 7
      %p128 = por %p126, %p127
      %p129 = scmp.ne.s32.totalorder %s118, %s119
      %p130 = scmp.eq.s32.totalorder %s33, 0
      %p131 = por %p129, %p130
      %p132 = scmp.ne.s32.totalorder %s118, %s119
      %p133 = scmp.eq.s32.totalorder %s34, 7
      %p134 = por %p132, %p133
      %p136 = scmp.ne.s32.totalorder %s119, %s135
      %p137 = scmp.eq.s32.totalorder %s34, 0
      %p138 = por %p136, %p137
      %s140 = sadd.s32 %s139, 1
      %p143 = scmp.eq.s32.totalorder %s28, 7
      %p144 = scmp.ne.s32.totalorder %s139, %s141
      %p145 = scmp.eq.s32.totalorder %s28, 0
      %p146 = por %p144, %p145
      %p147 = scmp.ne.s32.totalorder %s139, %s141
      %p148 = scmp.eq.s32.totalorder %s33, 7
      %p149 = por %p147, %p148
      %p150 = scmp.ne.s32.totalorder %s141, %s142
      %p151 = scmp.eq.s32.totalorder %s33, 0
      %p152 = por %p150, %p151
      %p153 = scmp.ne.s32.totalorder %s141, %s142
      %p154 = scmp.eq.s32.totalorder %s34, 7
      %p155 = por %p153, %p154
      %p157 = scmp.ne.s32.totalorder %s142, %s156
      %p158 = scmp.eq.s32.totalorder %s34, 0
      %p159 = por %p157, %p158
      %s161 = sadd.s32 %s160, 1
      %p164 = scmp.eq.s32.totalorder %s28, 7
      %p165 = scmp.ne.s32.totalorder %s160, %s162
      %p166 = scmp.eq.s32.totalorder %s28, 0
      %p167 = por %p165, %p166
      %p168 = scmp.ne.s32.totalorder %s160, %s162
      %p169 = scmp.eq.s32.totalorder %s33, 7
      %p170 = por %p168, %p169
      %p171 = scmp.ne.s32.totalorder %s162, %s163
      %p172 = scmp.eq.s32.totalorder %s33, 0
      %p173 = por %p171, %p172
      %p174 = scmp.ne.s32.totalorder %s162, %s163
      %p175 = scmp.eq.s32.totalorder %s34, 7
      %p176 = por %p174, %p175
      %p178 = scmp.ne.s32.totalorder %s163, %s177
      %p179 = scmp.eq.s32.totalorder %s34, 0
      %p180 = por %p178, %p179
      %s182 = sadd.s32 %s181, 1
      %p185 = scmp.eq.s32.totalorder %s28, 7
      %p186 = scmp.ne.s32.totalorder %s181, %s183
      %p187 = scmp.eq.s32.totalorder %s28, 0
      %p188 = por %p186, %p187
      %p189 = scmp.ne.s32.totalorder %s181, %s183
      %p190 = scmp.eq.s32.totalorder %s33, 7
      %p191 = por %p189, %p190
      %p192 = scmp.ne.s32.totalorder %s183, %s184
      %p193 = scmp.eq.s32.totalorder %s33, 0
      %p194 = por %p192, %p193
      %p195 = scmp.ne.s32.totalorder %s183, %s184
      %p196 = scmp.eq.s32.totalorder %s34, 7
      %p197 = por %p195, %p196
      %p199 = scmp.ne.s32.totalorder %s184, %s198
      %p200 = scmp.eq.s32.totalorder %s34, 0
      %p201 = por %p199, %p200
      %s203 = sadd.s32 %s202, 1
      %p206 = scmp.eq.s32.totalorder %s28, 7
      %p207 = scmp.ne.s32.totalorder %s202, %s204
      %p208 = scmp.eq.s32.totalorder %s28, 0
      %p209 = por %p207, %p208
      %p210 = scmp.ne.s32.totalorder %s202, %s204
      %p211 = scmp.eq.s32.totalorder %s33, 7
      %p212 = por %p210, %p211
      %p213 = scmp.ne.s32.totalorder %s204, %s205
      %p214 = scmp.eq.s32.totalorder %s33, 0
      %p215 = por %p213, %p214
      %p216 = scmp.ne.s32.totalorder %s204, %s205
      %p217 = scmp.eq.s32.totalorder %s34, 7
      %p218 = por %p216, %p217
      %p220 = scmp.ne.s32.totalorder %s205, %s219
      %p221 = scmp.eq.s32.totalorder %s34, 0
      %p222 = por %p220, %p221
      %s224 = sadd.s32 %s223, 1
      %p227 = scmp.eq.s32.totalorder %s28, 7
      %p228 = scmp.ne.s32.totalorder %s223, %s225
      %p229 = scmp.eq.s32.totalorder %s28, 0
      %p230 = por %p228, %p229
      %p231 = scmp.ne.s32.totalorder %s223, %s225
      %p232 = scmp.eq.s32.totalorder %s33, 7
      %p233 = por %p231, %p232
      %p234 = scmp.ne.s32.totalorder %s225, %s226
      %p235 = scmp.eq.s32.totalorder %s33, 0
      %p236 = por %p234, %p235
      %p237 = scmp.ne.s32.totalorder %s225, %s226
      %p238 = scmp.eq.s32.totalorder %s34, 7
      %p239 = por %p237, %p238
      %p241 = scmp.ne.s32.totalorder %s226, %s240
      %p242 = scmp.eq.s32.totalorder %s34, 0
      %p243 = por %p241, %p242
      %s245 = sadd.s32 %s244, 1
      %p248 = scmp.eq.s32.totalorder %s28, 7
      %p249 = scmp.ne.s32.totalorder %s244, %s246
      %p250 = scmp.eq.s32.totalorder %s28, 0
      %p251 = por %p249, %p250
      %p252 = scmp.ne.s32.totalorder %s244, %s246
      %p253 = scmp.eq.s32.totalorder %s33, 7
      %p254 = por %p252, %p253
      %p255 = scmp.ne.s32.totalorder %s246, %s247
      %p256 = scmp.eq.s32.totalorder %s33, 0
      %p257 = por %p255, %p256
      %p258 = scmp.ne.s32.totalorder %s246, %s247
      %p259 = scmp.eq.s32.totalorder %s34, 7
      %p260 = por %p258, %p259
      %p262 = scmp.ne.s32.totalorder %s247, %s261
      %p263 = scmp.eq.s32.totalorder %s34, 0
      %p264 = por %p262, %p263
      %s266 = sadd.s32 %s265, 1
      %p269 = scmp.eq.s32.totalorder %s28, 7
      %p270 = scmp.ne.s32.totalorder %s265, %s267
      %p271 = scmp.eq.s32.totalorder %s28, 0
      %p272 = por %p270, %p271
      %p273 = scmp.ne.s32.totalorder %s265, %s267
      %p274 = scmp.eq.s32.totalorder %s33, 7
      %p275 = por %p273, %p274
      %p276 = scmp.ne.s32.totalorder %s267, %s268
      %p277 = scmp.eq.s32.totalorder %s33, 0
      %p278 = por %p276, %p277
      %p279 = scmp.ne.s32.totalorder %s267, %s268
      %p280 = scmp.eq.s32.totalorder %s34, 7
      %p281 = por %p279, %p280
      %p283 = scmp.ne.s32.totalorder %s268, %s282
      %p284 = scmp.eq.s32.totalorder %s34, 0
      %p285 = por %p283, %p284
      %s287 = sadd.s32 %s286, 1
      %p290 = scmp.eq.s32.totalorder %s28, 7
      %p291 = scmp.ne.s32.totalorder %s286, %s288
      %p292 = scmp.eq.s32.totalorder %s28, 0
      %p293 = por %p291, %p292
      %p294 = scmp.ne.s32.totalorder %s286, %s288
      %p295 = scmp.eq.s32.totalorder %s33, 7
      %p296 = por %p294, %p295
      %p297 = scmp.ne.s32.totalorder %s288, %s289
      %p298 = scmp.eq.s32.totalorder %s33, 0
      %p299 = por %p297, %p298
      %p300 = scmp.ne.s32.totalorder %s288, %s289
      %p301 = scmp.eq.s32.totalorder %s34, 7
      %p302 = por %p300, %p301
      %p304 = scmp.ne.s32.totalorder %s289, %s303
      %p305 = scmp.eq.s32.totalorder %s34, 0
      %p306 = por %p304, %p305
      %s307 = ssub.s32 %s35, %s54
      %s308 = ssub.s32 %s36, %s50
      %s309 = sor.u32 %s307, %s308
      %p310 = scmp.eq.s32.totalorder %s309, 0
      %s312 = sadd.s32 %s311, 1
      %s313 = scalar_select %p310, %s311, %s312
      %p316 = pneg %p310
      %p317 = scmp.eq.s32.totalorder %s28, 7
      %p318 = por %p316, %p317
      %p319 = scmp.ne.s32.totalorder %s311, %s314
      %p320 = scmp.eq.s32.totalorder %s28, 0
      %p321 = por %p319, %p320
      %p322 = scmp.ne.s32.totalorder %s311, %s314
      %p323 = scmp.eq.s32.totalorder %s33, 7
      %p324 = por %p322, %p323
      %p325 = scmp.ne.s32.totalorder %s314, %s315
      %p326 = scmp.eq.s32.totalorder %s33, 0
      %p327 = por %p325, %p326
      %p328 = scmp.ne.s32.totalorder %s314, %s315
      %p329 = scmp.eq.s32.totalorder %s34, 7
      %p330 = por %p328, %p329
      %p332 = scmp.ne.s32.totalorder %s315, %s331
      %p333 = scmp.eq.s32.totalorder %s34, 0
      %p334 = por %p332, %p333
      %p335 = scmp.le.s32.totalorder 1, %s28
      %p336 = scmp.lt.s32.totalorder %s28, 9
      %p337 = pnand %p335, %p336
      %p338 = pneg %p337
      // Predicated region
      $region9: #{tpu_custom_call.1} parent=5 // pred_check
        _
      $region10: #{tpu_custom_call.1} parent=5 // pred_check_branch
        %340 = sbr.rel (%p337) target = $region12
      $region11: #{tpu_custom_call.1} parent=5 // pred_region
        %s341 = ssub.s32 %s28, 1
        // Predicated region
        $region13: #{tpu_custom_call.1} parent=11 // pred_check
          %p342 = pneg %p152
        $region14: #{tpu_custom_call.1} parent=11 // pred_check_branch
          %344 = sbr.rel (%p342) target = $region16
        $region15: #{tpu_custom_call.1} parent=11 // pred_region
          %s346 = ssub.s32 1024, 1024
          %347 = vsyncadd [#allocation13], %s346
          %s348 = sshll.u32 [#allocation12], 4
          %s349 = int_to_ptr.vmem [resolvable:$true] %s348
          %354 = dma.hbm_to_vmem [thread:$0]  %s3, 1024, %s349, [#allocation13], 64, 64, 4
        $region16: #{tpu_custom_call.1} parent=11 // pred_fallthru
          _
        // Predicated region
        $region17: #{tpu_custom_call.1} parent=11 // pred_check
          %p355 = pneg %p173
        $region18: #{tpu_custom_call.1} parent=11 // pred_check_branch
          %357 = sbr.rel (%p355) target = $region20
        $region19: #{tpu_custom_call.1} parent=11 // pred_region
          _
        $region20: #{tpu_custom_call.1} parent=11 // pred_fallthru
          _
        // Predicated region
        $region21: #{tpu_custom_call.1} parent=11 // pred_check
          %p358 = pneg %p194
        $region22: #{tpu_custom_call.1} parent=11 // pred_check_branch
          %360 = sbr.rel (%p358) target = $region24
        $region23: #{tpu_custom_call.1} parent=11 // pred_region
          %s362 = ssub.s32 1024, 1024
          %363 = vsyncadd [#allocation13], %s362
          %s364 = sshll.u32 [#allocation14], 4
          %s365 = int_to_ptr.vmem [resolvable:$true] %s364
          %370 = dma.hbm_to_vmem [thread:$0]  %s5, 1024, %s365, [#allocation13], 64, 64, 4
        $region24: #{tpu_custom_call.1} parent=11 // pred_fallthru
          _
        // Predicated region
        $region25: #{tpu_custom_call.1} parent=11 // pred_check
          %p371 = pneg %p215
        $region26: #{tpu_custom_call.1} parent=11 // pred_check_branch
          %373 = sbr.rel (%p371) target = $region28
        $region27: #{tpu_custom_call.1} parent=11 // pred_region
          _
        $region28: #{tpu_custom_call.1} parent=11 // pred_fallthru
          _
        // Predicated region
        $region29: #{tpu_custom_call.1} parent=11 // pred_check
          %p374 = pneg %p236
        $region30: #{tpu_custom_call.1} parent=11 // pred_check_branch
          %376 = sbr.rel (%p374) target = $region32
        $region31: #{tpu_custom_call.1} parent=11 // pred_region
          %s378 = ssub.s32 1024, 1024
          %379 = vsyncadd [#allocation16], %s378
          %s380 = sshll.u32 [#allocation15], 4
          %s381 = int_to_ptr.vmem [resolvable:$true] %s380
          %386 = dma.hbm_to_vmem [thread:$0]  %s7, 1024, %s381, [#allocation16], 64, 64, 4
        $region32: #{tpu_custom_call.1} parent=11 // pred_fallthru
          _
        // Predicated region
        $region33: #{tpu_custom_call.1} parent=11 // pred_check
          %p387 = pneg %p257
        $region34: #{tpu_custom_call.1} parent=11 // pred_check_branch
          %389 = sbr.rel (%p387) target = $region36
        $region35: #{tpu_custom_call.1} parent=11 // pred_region
          _
        $region36: #{tpu_custom_call.1} parent=11 // pred_fallthru
          _
        // Predicated region
        $region37: #{tpu_custom_call.1} parent=11 // pred_check
          %p390 = pneg %p278
        $region38: #{tpu_custom_call.1} parent=11 // pred_check_branch
          %392 = sbr.rel (%p390) target = $region40
        $region39: #{tpu_custom_call.1} parent=11 // pred_region
          %s394 = ssub.s32 1024, 1024
          %395 = vsyncadd [#allocation16], %s394
          %s396 = sshll.u32 [#allocation17], 4
          %s397 = int_to_ptr.vmem [resolvable:$true] %s396
          %402 = dma.hbm_to_vmem [thread:$0]  %s9, 1024, %s397, [#allocation16], 64, 64, 4
        $region40: #{tpu_custom_call.1} parent=11 // pred_fallthru
          _
        // Predicated region
        $region41: #{tpu_custom_call.1} parent=11 // pred_check
          %p403 = pneg %p299
        $region42: #{tpu_custom_call.1} parent=11 // pred_check_branch
          %405 = sbr.rel (%p403) target = $region44
        $region43: #{tpu_custom_call.1} parent=11 // pred_region
          _
        $region44: #{tpu_custom_call.1} parent=11 // pred_fallthru
          _
      $region12: #{tpu_custom_call.1} parent=5 // pred_fallthru
        _
      %p406 = scmp.lt.s32.totalorder %s28, 8
      // Predicated region
      $region45: #{tpu_custom_call.1} parent=5 // pred_check
        %p407 = pneg %p406
      $region46: #{tpu_custom_call.1} parent=5 // pred_check_branch
        %409 = sbr.rel (%p407) target = $region48
      $region47: #{tpu_custom_call.1} parent=5 // pred_region
        // Predicated region
        $region49: #{tpu_custom_call.1} parent=47 // pred_check
          %p410 = pneg %p69
        $region50: #{tpu_custom_call.1} parent=47 // pred_check_branch
          %412 = sbr.rel (%p410) target = $region52
        $region51: #{tpu_custom_call.1} parent=47 // pred_region
          %s413 = sand.u32 %s59, 1
          %s414 = scalar_lea.sflag [#allocation7], %s413
          %s415 = sand.u32 %s59, 1
          %s416 = smul.addr %s415, 16
          %s417 = scalar_lea.vmem [#allocation6], %s416
          %s418 = smul.u32 2, %s36
          %s420 = ssub.s32 256, 256
          %421 = vsyncadd %s414, %s420
          %s422 = smul.addr %s35, 4
          %s423 = sadd.s32 %s418, %s422
          %s424 = smul.addr %s423, 128
          %s425 = scalar_lea.hbm %s0, %s424
          %s426 = sshll.u32 %s417, 4
          %s427 = int_to_ptr.vmem [resolvable:$true] %s426
          %432 = dma.hbm_to_vmem [thread:$0]  %s425, 256, %s427, %s414, 128, 128, 8
        $region52: #{tpu_custom_call.1} parent=47 // pred_fallthru
          _
        // Predicated region
        $region53: #{tpu_custom_call.1} parent=47 // pred_check
          %p433 = pneg %p97
        $region54: #{tpu_custom_call.1} parent=47 // pred_check_branch
          %435 = sbr.rel (%p433) target = $region56
        $region55: #{tpu_custom_call.1} parent=47 // pred_region
          %s436 = sand.u32 %s28, 1
          %s437 = scalar_lea.sflag [#allocation10], %s436
          %s438 = sand.u32 %s87, 1
          %s439 = smul.addr %s438, 16
          %s440 = scalar_lea.vmem [#allocation9], %s439
          %s441 = smul.u32 2, %s37
          %s443 = ssub.s32 256, 256
          %444 = vsyncadd %s437, %s443
          %s445 = smul.addr %s35, 4
          %s446 = sadd.s32 %s441, %s445
          %s447 = smul.addr %s446, 128
          %s448 = scalar_lea.hbm %s1, %s447
          %s449 = sshll.u32 %s440, 4
          %s450 = int_to_ptr.vmem [resolvable:$true] %s449
          %455 = dma.hbm_to_vmem [thread:$0]  %s448, 256, %s450, %s437, 128, 128, 8
        $region56: #{tpu_custom_call.1} parent=47 // pred_fallthru
          _
        // Predicated region
        $region57: #{tpu_custom_call.1} parent=47 // pred_check
          %p456 = pneg %p125
        $region58: #{tpu_custom_call.1} parent=47 // pred_check_branch
          %458 = sbr.rel (%p456) target = $region60
        $region59: #{tpu_custom_call.1} parent=47 // pred_region
          %s459 = sand.u32 %s28, 1
          %s460 = scalar_lea.sflag [#allocation10], %s459
          %s461 = sand.u32 %s115, 1
          %s462 = smul.addr %s461, 16
          %s463 = scalar_lea.vmem [#allocation11], %s462
          %s464 = smul.u32 2, %s37
          %s466 = ssub.s32 256, 256
          %467 = vsyncadd %s460, %s466
          %s468 = smul.addr %s35, 4
          %s469 = sadd.s32 %s464, %s468
          %s470 = smul.addr %s469, 128
          %s471 = scalar_lea.hbm %s2, %s470
          %s472 = sshll.u32 %s463, 4
          %s473 = int_to_ptr.vmem [resolvable:$true] %s472
          %478 = dma.hbm_to_vmem [thread:$0]  %s471, 256, %s473, %s460, 128, 128, 8
        $region60: #{tpu_custom_call.1} parent=47 // pred_fallthru
          _
      $region48: #{tpu_custom_call.1} parent=5 // pred_fallthru
        _
      %p479 = scmp.le.s32.totalorder 1, %s28
      %p480 = scmp.lt.s32.totalorder %s28, 9
      %p481 = pnand %p479, %p480
      %p482 = pneg %p481
      // Predicated region
      $region61: #{tpu_custom_call.1} parent=5 // pred_check
        _
      $region62: #{tpu_custom_call.1} parent=5 // pred_check_branch
        %484 = sbr.rel (%p481) target = $region64
      $region63: #{tpu_custom_call.1} parent=5 // pred_region
        %s485 = ssub.s32 %s28, 1
        %s486 = sand.u32 %s62, 1
        %s487 = scalar_lea.sflag [#allocation7], %s486
        %s488 = sand.u32 %s62, 1
        %s489 = smul.addr %s488, 16
        %s490 = scalar_lea.vmem [#allocation6], %s489
        // Predicated region
        $region65: #{tpu_custom_call.1} parent=63 // pred_check
          %p491 = pneg %p75
        $region66: #{tpu_custom_call.1} parent=63 // pred_check_branch
          %493 = sbr.rel (%p491) target = $region68
        $region67: #{tpu_custom_call.1} parent=63 // pred_region
          %494 = dma.done %s487, 256
        $region68: #{tpu_custom_call.1} parent=63 // pred_fallthru
          _
        %s495 = sand.u32 %s33, 1
        %s496 = scalar_lea.sflag [#allocation10], %s495
        %s497 = sand.u32 %s90, 1
        %s498 = smul.addr %s497, 16
        %s499 = scalar_lea.vmem [#allocation9], %s498
        // Predicated region
        $region69: #{tpu_custom_call.1} parent=63 // pred_check
          %p500 = pneg %p103
        $region70: #{tpu_custom_call.1} parent=63 // pred_check_branch
          %502 = sbr.rel (%p500) target = $region72
        $region71: #{tpu_custom_call.1} parent=63 // pred_region
          %503 = dma.done %s496, 256
        $region72: #{tpu_custom_call.1} parent=63 // pred_fallthru
          _
        %s504 = sand.u32 %s33, 1
        %s505 = scalar_lea.sflag [#allocation10], %s504
        %s506 = sand.u32 %s118, 1
        %s507 = smul.addr %s506, 16
        %s508 = scalar_lea.vmem [#allocation11], %s507
        // Predicated region
        $region73: #{tpu_custom_call.1} parent=63 // pred_check
          %p509 = pneg %p131
        $region74: #{tpu_custom_call.1} parent=63 // pred_check_branch
          %511 = sbr.rel (%p509) target = $region76
        $region75: #{tpu_custom_call.1} parent=63 // pred_region
          %512 = dma.done %s505, 256
        $region76: #{tpu_custom_call.1} parent=63 // pred_fallthru
          _
        // Predicated region
        $region77: #{tpu_custom_call.1} parent=63 // pred_check
          %p513 = pneg %p152
        $region78: #{tpu_custom_call.1} parent=63 // pred_check_branch
          %515 = sbr.rel (%p513) target = $region80
        $region79: #{tpu_custom_call.1} parent=63 // pred_region
          %516 = dma.done [#allocation13], 1024
        $region80: #{tpu_custom_call.1} parent=63 // pred_fallthru
          _
        // Predicated region
        $region81: #{tpu_custom_call.1} parent=63 // pred_check
          %p517 = pneg %p194
        $region82: #{tpu_custom_call.1} parent=63 // pred_check_branch
          %519 = sbr.rel (%p517) target = $region84
        $region83: #{tpu_custom_call.1} parent=63 // pred_region
          %520 = dma.done [#allocation13], 1024
        $region84: #{tpu_custom_call.1} parent=63 // pred_fallthru
          _
        // Predicated region
        $region85: #{tpu_custom_call.1} parent=63 // pred_check
          %p521 = pneg %p236
        $region86: #{tpu_custom_call.1} parent=63 // pred_check_branch
          %523 = sbr.rel (%p521) target = $region88
        $region87: #{tpu_custom_call.1} parent=63 // pred_region
          %524 = dma.done [#allocation16], 1024
        $region88: #{tpu_custom_call.1} parent=63 // pred_fallthru
          _
        // Predicated region
        $region89: #{tpu_custom_call.1} parent=63 // pred_check
          %p525 = pneg %p278
        $region90: #{tpu_custom_call.1} parent=63 // pred_check_branch
          %527 = sbr.rel (%p525) target = $region92
        $region91: #{tpu_custom_call.1} parent=63 // pred_region
          %528 = dma.done [#allocation16], 1024
        $region92: #{tpu_custom_call.1} parent=63 // pred_fallthru
          _
        %s529 = sand.u32 %s62, 1
        %s530 = scalar_lea.sflag [#allocation7], %s529
        %s531 = sand.u32 %s62, 1
        %s532 = smul.addr %s531, 16
        %s533 = scalar_lea.vmem [#allocation6], %s532
        %p534 = pneg %p75
        %p535 = pneg %p72
        %s536 = sand.u32 %s33, 1
        %s537 = scalar_lea.sflag [#allocation10], %s536
        %s538 = sand.u32 %s90, 1
        %s539 = smul.addr %s538, 16
        %s540 = scalar_lea.vmem [#allocation9], %s539
        %p541 = pneg %p103
        %p542 = pneg %p100
        %s543 = sand.u32 %s33, 1
        %s544 = scalar_lea.sflag [#allocation10], %s543
        %s545 = sand.u32 %s118, 1
        %s546 = smul.addr %s545, 16
        %s547 = scalar_lea.vmem [#allocation11], %s546
        %p548 = pneg %p131
        %p549 = pneg %p128
        %p550 = pneg %p152
        %p551 = pneg %p149
        %p552 = pneg %p173
        %p553 = pneg %p170
        %p554 = pneg %p194
        %p555 = pneg %p191
        %p556 = pneg %p215
        %p557 = pneg %p212
        %p558 = pneg %p236
        %p559 = pneg %p233
        %p560 = pneg %p257
        %p561 = pneg %p254
        %p562 = pneg %p278
        %p563 = pneg %p275
        %p564 = pneg %p299
        %p565 = pneg %p296
        %p566 = pneg %p327
        %p567 = pneg %p324
        %s568 = sand.u32 %s314, 1
        %s569 = scalar_lea.sflag [#allocation8], %s568
        %s570 = sand.u32 %s314, 1
        %s571 = smul.addr %s570, 16
        %s572 = scalar_lea.vmem [#allocation18], %s571
        %s573 = smul.u32 2, %s39
        %s574 = smul.u32 2, %s40
        %s575 = smul.u32 2, %s40
        %s576 = smul.u32 2, %s39
        %p578 = scmp.eq.s32.totalorder %s40, 0
        // Predicated region
        $region93: #{tpu_custom_call.1} parent=63 // pred_check
          %p579 = pneg %p578
        $region94: #{tpu_custom_call.1} parent=63 // pred_check_branch
          %581 = sbr.rel (%p579) target = $region96
        $region95: #{tpu_custom_call.1} parent=63 // pred_region
          %v582 = vld [vmem:[%s490] sm:$0xff]
          %v583 = vld [vmem:[%s490 + $0x8] sm:$0xff]
          %v584 = vpack.c.bf16 %v583, %v582
          %v585 = vld [vmem:[#allocation12] sm:$0xf]
          %v586 = vld [vmem:[#allocation12 + $0x4] sm:$0xf]
          %v587 = vld [vmem:[#allocation12 + $0x8] sm:$0xf]
          %v588 = vld [vmem:[#allocation12 + $0xc] sm:$0xf]
          %v589 = vld [vmem:[#allocation12 + $0x10] sm:$0xf]
          %v590 = vld [vmem:[#allocation12 + $0x14] sm:$0xf]
          %v591 = vld [vmem:[#allocation12 + $0x18] sm:$0xf]
          %v592 = vld [vmem:[#allocation12 + $0x1c] sm:$0xf]
          %v593 = vld [vmem:[#allocation12 + $0x20] sm:$0xf]
          %v594 = vld [vmem:[#allocation12 + $0x24] sm:$0xf]
          %v595 = vld [vmem:[#allocation12 + $0x28] sm:$0xf]
          %v596 = vld [vmem:[#allocation12 + $0x2c] sm:$0xf]
          %v597 = vld [vmem:[#allocation12 + $0x30] sm:$0xf]
          %v598 = vld [vmem:[#allocation12 + $0x34] sm:$0xf]
          %v599 = vld [vmem:[#allocation12 + $0x38] sm:$0xf]
          %v600 = vld [vmem:[#allocation12 + $0x3c] sm:$0xf]
          %v601 = vld [vmem:[%s4] sm:$0x1]
          %v603 = vlaneseq
          %v604 = vshrl.u32 %v603, 7
          %v605 = vsub.s32 0, %v604
          %v606 = vrot.slane %v601, %v605
          %v624 = vunpack.c.l.b16 %v585
          %v625 = vunpack.c.l.b16 %v586
          %v626 = vunpack.c.l.b16 %v587
          %v627 = vunpack.c.l.b16 %v588
          %v628 = vunpack.c.l.b16 %v589
          %v629 = vunpack.c.l.b16 %v590
          %v630 = vunpack.c.l.b16 %v591
          %v631 = vunpack.c.l.b16 %v592
          %v632 = vunpack.c.l.b16 %v593
          %v633 = vunpack.c.l.b16 %v594
          %v634 = vunpack.c.l.b16 %v595
          %v635 = vunpack.c.l.b16 %v596
          %v636 = vunpack.c.l.b16 %v597
          %v637 = vunpack.c.l.b16 %v598
          %v638 = vunpack.c.l.b16 %v599
          %v639 = vunpack.c.l.b16 %v600
          %v640 = vpack.c.b16 %v625, %v624
          %v641 = vpack.c.b16 %v627, %v626
          %v642 = vpack.c.b16 %v629, %v628
          %v643 = vpack.c.b16 %v631, %v630
          %v644 = vpack.c.b16 %v633, %v632
          %v645 = vpack.c.b16 %v635, %v634
          %v646 = vpack.c.b16 %v637, %v636
          %v647 = vpack.c.b16 %v639, %v638
          %656 = vmatprep.subr.bf16.mxu0 0
          %657 = vmatpush1.bf16.msra.mxu0 %v640
          %658 = vmatprep.subr.bf16.mxu0 0
          %659 = vmatpush1.bf16.msra.mxu0 %v641
          %660 = vmatprep.subr.bf16.mxu0 0
          %661 = vmatpush1.bf16.msra.mxu0 %v642
          %662 = vmatprep.subr.bf16.mxu0 0
          %663 = vmatpush1.bf16.msra.mxu0 %v643
          %664 = vmatprep.subr.bf16.mxu0 0
          %665 = vmatpush1.bf16.msra.mxu0 %v644
          %666 = vmatprep.subr.bf16.mxu0 0
          %667 = vmatpush1.bf16.msra.mxu0 %v645
          %668 = vmatprep.subr.bf16.mxu0 0
          %669 = vmatpush1.bf16.msra.mxu0 %v646
          %670 = vmatprep.subr.bf16.mxu0 0
          %671 = vmatpush1.bf16.msra.mxu0 %v647
          %672 = vmatprep.subr.bf16.mxu0 0
          %673 = vmatpush1.bf16.msra.mxu0 0
          %674 = vmatprep.subr.bf16.mxu0 0
          %675 = vmatpush1.bf16.msra.mxu0 0
          %676 = vmatprep.subr.bf16.mxu0 0
          %677 = vmatpush1.bf16.msra.mxu0 0
          %678 = vmatprep.subr.bf16.mxu0 0
          %679 = vmatpush1.bf16.msra.mxu0 0
          %680 = vmatprep.subr.bf16.mxu0 0
          %681 = vmatpush1.bf16.msra.mxu0 0
          %682 = vmatprep.subr.bf16.mxu0 0
          %683 = vmatpush1.bf16.msra.mxu0 0
          %684 = vmatprep.subr.bf16.mxu0 0
          %685 = vmatpush1.bf16.msra.mxu0 0
          %686 = vmatprep.subr.bf16.mxu0 0
          %687 = vmatpush1.bf16.msra.mxu0 0
          %688 = vmatprep.mubr.bf16.mxu0 0
          %689 = vmatmul.mubr.bf16.gmra.mrb[0].mxu0 %v584
          %v690 = vpop.f32.mrb[0].mxu0
          %v691 = vadd.f32 %v606, %v690
          %v692 = vpop.f32.mrb[0].mxu0
          %v693 = vpop.f32.mrb[0].mxu0
          %v694 = vadd.f32 %v606, %v693
          %v695 = vpop.f32.mrb[0].mxu0
          %696 = vdwg.mxu0
          %v697 = vmul.f32 %v691, 0.17677669
          %v698 = vmul.f32 %v694, 0.17677669
          %v699 = vpack.c.bf16 %v698, %v697
          %700 = vst [vmem:[#allocation2] sm:$0xff] %v699
          %vm701 = vcmask 7168
          %702 = vst.msk [vmem:[#allocation3] sm:$0xff] %vm701, -inf
          %703 = vst.msk [vmem:[#allocation3 + $0x8] sm:$0xff] %vm701, -inf
          %704 = vst.msk [vmem:[#allocation3 + $0x10] sm:$0xff] %vm701, -inf
          %705 = vst.msk [vmem:[#allocation3 + $0x18] sm:$0xff] %vm701, -inf
          %706 = vst.msk [vmem:[#allocation3 + $0x20] sm:$0xff] %vm701, -inf
          %707 = vst.msk [vmem:[#allocation3 + $0x28] sm:$0xff] %vm701, -inf
          %708 = vst.msk [vmem:[#allocation3 + $0x30] sm:$0xff] %vm701, -inf
          %709 = vst.msk [vmem:[#allocation3 + $0x38] sm:$0xff] %vm701, -inf
          %710 = vst.msk [vmem:[#allocation4] sm:$0xff] %vm701, 0.0
          %711 = vst.msk [vmem:[#allocation4 + $0x8] sm:$0xff] %vm701, 0.0
          %712 = vst.msk [vmem:[#allocation4 + $0x10] sm:$0xff] %vm701, 0.0
          %713 = vst.msk [vmem:[#allocation4 + $0x18] sm:$0xff] %vm701, 0.0
          %714 = vst.msk [vmem:[#allocation4 + $0x20] sm:$0xff] %vm701, 0.0
          %715 = vst.msk [vmem:[#allocation4 + $0x28] sm:$0xff] %vm701, 0.0
          %716 = vst.msk [vmem:[#allocation4 + $0x30] sm:$0xff] %vm701, 0.0
          %717 = vst.msk [vmem:[#allocation4 + $0x38] sm:$0xff] %vm701, 0.0
          %718 = vst [vmem:[#allocation5] sm:$0xff] 0.0
          %719 = vst [vmem:[#allocation5 + $0x8] sm:$0xff] 0.0
        $region96: #{tpu_custom_call.1} parent=63 // pred_fallthru
          _
        %v720 = vld [vmem:[%s499] sm:$0xff]
        %v721 = vld [vmem:[%s499 + $0x8] sm:$0xff]
        %v722 = vpack.c.bf16 %v721, %v720
        %v723 = vld [vmem:[%s508] sm:$0xff]
        %v724 = vld [vmem:[%s508 + $0x8] sm:$0xff]
        %v725 = vpack.c.bf16 %v724, %v723
        %v726 = vld [vmem:[#allocation14] sm:$0xf]
        %v727 = vld [vmem:[#allocation14 + $0x4] sm:$0xf]
        %v728 = vld [vmem:[#allocation14 + $0x8] sm:$0xf]
        %v729 = vld [vmem:[#allocation14 + $0xc] sm:$0xf]
        %v730 = vld [vmem:[#allocation14 + $0x10] sm:$0xf]
        %v731 = vld [vmem:[#allocation14 + $0x14] sm:$0xf]
        %v732 = vld [vmem:[#allocation14 + $0x18] sm:$0xf]
        %v733 = vld [vmem:[#allocation14 + $0x1c] sm:$0xf]
        %v734 = vld [vmem:[#allocation14 + $0x20] sm:$0xf]
        %v735 = vld [vmem:[#allocation14 + $0x24] sm:$0xf]
        %v736 = vld [vmem:[#allocation14 + $0x28] sm:$0xf]
        %v737 = vld [vmem:[#allocation14 + $0x2c] sm:$0xf]
        %v738 = vld [vmem:[#allocation14 + $0x30] sm:$0xf]
        %v739 = vld [vmem:[#allocation14 + $0x34] sm:$0xf]
        %v740 = vld [vmem:[#allocation14 + $0x38] sm:$0xf]
        %v741 = vld [vmem:[#allocation14 + $0x3c] sm:$0xf]
        %v742 = vld [vmem:[%s6] sm:$0x1]
        %v744 = vlaneseq
        %v745 = vshrl.u32 %v744, 7
        %v746 = vsub.s32 0, %v745
        %v747 = vrot.slane %v742, %v746
        %v765 = vunpack.c.l.b16 %v726
        %v766 = vunpack.c.l.b16 %v727
        %v767 = vunpack.c.l.b16 %v728
        %v768 = vunpack.c.l.b16 %v729
        %v769 = vunpack.c.l.b16 %v730
        %v770 = vunpack.c.l.b16 %v731
        %v771 = vunpack.c.l.b16 %v732
        %v772 = vunpack.c.l.b16 %v733
        %v773 = vunpack.c.l.b16 %v734
        %v774 = vunpack.c.l.b16 %v735
        %v775 = vunpack.c.l.b16 %v736
        %v776 = vunpack.c.l.b16 %v737
        %v777 = vunpack.c.l.b16 %v738
        %v778 = vunpack.c.l.b16 %v739
        %v779 = vunpack.c.l.b16 %v740
        %v780 = vunpack.c.l.b16 %v741
        %v781 = vpack.c.b16 %v766, %v765
        %v782 = vpack.c.b16 %v768, %v767
        %v783 = vpack.c.b16 %v770, %v769
        %v784 = vpack.c.b16 %v772, %v771
        %v785 = vpack.c.b16 %v774, %v773
        %v786 = vpack.c.b16 %v776, %v775
        %v787 = vpack.c.b16 %v778, %v777
        %v788 = vpack.c.b16 %v780, %v779
        %797 = vmatprep.subr.bf16.mxu0 0
        %798 = vmatpush1.bf16.msra.mxu0 %v781
        %799 = vmatprep.subr.bf16.mxu0 0
        %800 = vmatpush1.bf16.msra.mxu0 %v782
        %801 = vmatprep.subr.bf16.mxu0 0
        %802 = vmatpush1.bf16.msra.mxu0 %v783
        %803 = vmatprep.subr.bf16.mxu0 0
        %804 = vmatpush1.bf16.msra.mxu0 %v784
        %805 = vmatprep.subr.bf16.mxu0 0
        %806 = vmatpush1.bf16.msra.mxu0 %v785
        %807 = vmatprep.subr.bf16.mxu0 0
        %808 = vmatpush1.bf16.msra.mxu0 %v786
        %809 = vmatprep.subr.bf16.mxu0 0
        %810 = vmatpush1.bf16.msra.mxu0 %v787
        %811 = vmatprep.subr.bf16.mxu0 0
        %812 = vmatpush1.bf16.msra.mxu0 %v788
        %813 = vmatprep.subr.bf16.mxu0 0
        %814 = vmatpush1.bf16.msra.mxu0 0
        %815 = vmatprep.subr.bf16.mxu0 0
        %816 = vmatpush1.bf16.msra.mxu0 0
        %817 = vmatprep.subr.bf16.mxu0 0
        %818 = vmatpush1.bf16.msra.mxu0 0
        %819 = vmatprep.subr.bf16.mxu0 0
        %820 = vmatpush1.bf16.msra.mxu0 0
        %821 = vmatprep.subr.bf16.mxu0 0
        %822 = vmatpush1.bf16.msra.mxu0 0
        %823 = vmatprep.subr.bf16.mxu0 0
        %824 = vmatpush1.bf16.msra.mxu0 0
        %825 = vmatprep.subr.bf16.mxu0 0
        %826 = vmatpush1.bf16.msra.mxu0 0
        %827 = vmatprep.subr.bf16.mxu0 0
        %828 = vmatpush1.bf16.msra.mxu0 0
        %829 = vmatprep.mubr.bf16.mxu0 0
        %830 = vmatmul.mubr.bf16.gmra.mrb[0].mxu0 %v722
        %v831 = vpop.f32.mrb[0].mxu0
        %v832 = vadd.f32 %v747, %v831
        %v833 = vpop.f32.mrb[0].mxu0
        %v834 = vpop.f32.mrb[0].mxu0
        %v835 = vadd.f32 %v747, %v834
        %v836 = vpop.f32.mrb[0].mxu0
        %837 = vdwg.mxu0
        %v838 = vld [vmem:[#allocation15] sm:$0xf]
        %v839 = vld [vmem:[#allocation15 + $0x4] sm:$0xf]
        %v840 = vld [vmem:[#allocation15 + $0x8] sm:$0xf]
        %v841 = vld [vmem:[#allocation15 + $0xc] sm:$0xf]
        %v842 = vld [vmem:[#allocation15 + $0x10] sm:$0xf]
        %v843 = vld [vmem:[#allocation15 + $0x14] sm:$0xf]
        %v844 = vld [vmem:[#allocation15 + $0x18] sm:$0xf]
        %v845 = vld [vmem:[#allocation15 + $0x1c] sm:$0xf]
        %v846 = vld [vmem:[#allocation15 + $0x20] sm:$0xf]
        %v847 = vld [vmem:[#allocation15 + $0x24] sm:$0xf]
        %v848 = vld [vmem:[#allocation15 + $0x28] sm:$0xf]
        %v849 = vld [vmem:[#allocation15 + $0x2c] sm:$0xf]
        %v850 = vld [vmem:[#allocation15 + $0x30] sm:$0xf]
        %v851 = vld [vmem:[#allocation15 + $0x34] sm:$0xf]
        %v852 = vld [vmem:[#allocation15 + $0x38] sm:$0xf]
        %v853 = vld [vmem:[#allocation15 + $0x3c] sm:$0xf]
        %v854 = vld [vmem:[%s8] sm:$0x1]
        %v856 = vlaneseq
        %v857 = vshrl.u32 %v856, 7
        %v858 = vsub.s32 0, %v857
        %v859 = vrot.slane %v854, %v858
        %v877 = vunpack.c.l.b16 %v838
        %v878 = vunpack.c.l.b16 %v839
        %v879 = vunpack.c.l.b16 %v840
        %v880 = vunpack.c.l.b16 %v841
        %v881 = vunpack.c.l.b16 %v842
        %v882 = vunpack.c.l.b16 %v843
        %v883 = vunpack.c.l.b16 %v844
        %v884 = vunpack.c.l.b16 %v845
        %v885 = vunpack.c.l.b16 %v846
        %v886 = vunpack.c.l.b16 %v847
        %v887 = vunpack.c.l.b16 %v848
        %v888 = vunpack.c.l.b16 %v849
        %v889 = vunpack.c.l.b16 %v850
        %v890 = vunpack.c.l.b16 %v851
        %v891 = vunpack.c.l.b16 %v852
        %v892 = vunpack.c.l.b16 %v853
        %v893 = vpack.c.b16 %v878, %v877
        %v894 = vpack.c.b16 %v880, %v879
        %v895 = vpack.c.b16 %v882, %v881
        %v896 = vpack.c.b16 %v884, %v883
        %v897 = vpack.c.b16 %v886, %v885
        %v898 = vpack.c.b16 %v888, %v887
        %v899 = vpack.c.b16 %v890, %v889
        %v900 = vpack.c.b16 %v892, %v891
        %909 = vmatprep.subr.bf16.mxu0 0
        %910 = vmatpush1.bf16.msra.mxu0 %v893
        %911 = vmatprep.subr.bf16.mxu0 0
        %912 = vmatpush1.bf16.msra.mxu0 %v894
        %913 = vmatprep.subr.bf16.mxu0 0
        %914 = vmatpush1.bf16.msra.mxu0 %v895
        %915 = vmatprep.subr.bf16.mxu0 0
        %916 = vmatpush1.bf16.msra.mxu0 %v896
        %917 = vmatprep.subr.bf16.mxu0 0
        %918 = vmatpush1.bf16.msra.mxu0 %v897
        %919 = vmatprep.subr.bf16.mxu0 0
        %920 = vmatpush1.bf16.msra.mxu0 %v898
        %921 = vmatprep.subr.bf16.mxu0 0
        %922 = vmatpush1.bf16.msra.mxu0 %v899
        %923 = vmatprep.subr.bf16.mxu0 0
        %924 = vmatpush1.bf16.msra.mxu0 %v900
        %925 = vmatprep.subr.bf16.mxu0 0
        %926 = vmatpush1.bf16.msra.mxu0 0
        %927 = vmatprep.subr.bf16.mxu0 0
        %928 = vmatpush1.bf16.msra.mxu0 0
        %929 = vmatprep.subr.bf16.mxu0 0
        %930 = vmatpush1.bf16.msra.mxu0 0
        %931 = vmatprep.subr.bf16.mxu0 0
        %932 = vmatpush1.bf16.msra.mxu0 0
        %933 = vmatprep.subr.bf16.mxu0 0
        %934 = vmatpush1.bf16.msra.mxu0 0
        %935 = vmatprep.subr.bf16.mxu0 0
        %936 = vmatpush1.bf16.msra.mxu0 0
        %937 = vmatprep.subr.bf16.mxu0 0
        %938 = vmatpush1.bf16.msra.mxu0 0
        %939 = vmatprep.subr.bf16.mxu0 0
        %940 = vmatpush1.bf16.msra.mxu0 0
        %941 = vmatprep.mubr.bf16.mxu0 0
        %942 = vmatmul.mubr.bf16.gmra.mrb[0].mxu0 %v725
        %v943 = vpop.f32.mrb[0].mxu0
        %v944 = vadd.f32 %v859, %v943
        %v945 = vpop.f32.mrb[0].mxu0
        %v946 = vpop.f32.mrb[0].mxu0
        %v947 = vadd.f32 %v859, %v946
        %v948 = vpop.f32.mrb[0].mxu0
        %949 = vdwg.mxu0
        %v950 = vpack.c.bf16 %v835, %v832
        %v951 = vpack.c.bf16 %v947, %v944
        %v952 = vld [vmem:[#allocation2] sm:$0xff]
        %vm953 = vcmask 261120
        %v955 = vsel %vm953, %v952, 0
        %v958 = vsel %vm953, %v950, 0
        %960 = vmatprep.subr.bf16.mxu0 0
        %961 = vmatpush1.bf16.xpose.msra.mxu0 %v958
        %962 = vmatprep.subr.bf16.mxu0 0
        %963 = vmatpush1.bf16.xpose.msra.mxu0 0
        %964 = vmatprep.subr.bf16.mxu0 0
        %965 = vmatpush1.bf16.xpose.msra.mxu0 0
        %966 = vmatprep.subr.bf16.mxu0 0
        %967 = vmatpush1.bf16.xpose.msra.mxu0 0
        %968 = vmatprep.subr.bf16.mxu0 0
        %969 = vmatpush1.bf16.xpose.msra.mxu0 0
        %970 = vmatprep.subr.bf16.mxu0 0
        %971 = vmatpush1.bf16.xpose.msra.mxu0 0
        %972 = vmatprep.subr.bf16.mxu0 0
        %973 = vmatpush1.bf16.xpose.msra.mxu0 0
        %974 = vmatprep.subr.bf16.mxu0 0
        %975 = vmatpush1.bf16.xpose.msra.mxu0 0
        %976 = vmatprep.subr.bf16.mxu0 0
        %977 = vmatpush1.bf16.xpose.msra.mxu0 0
        %978 = vmatprep.subr.bf16.mxu0 0
        %979 = vmatpush1.bf16.xpose.msra.mxu0 0
        %980 = vmatprep.subr.bf16.mxu0 0
        %981 = vmatpush1.bf16.xpose.msra.mxu0 0
        %982 = vmatprep.subr.bf16.mxu0 0
        %983 = vmatpush1.bf16.xpose.msra.mxu0 0
        %984 = vmatprep.subr.bf16.mxu0 0
        %985 = vmatpush1.bf16.xpose.msra.mxu0 0
        %986 = vmatprep.subr.bf16.mxu0 0
        %987 = vmatpush1.bf16.xpose.msra.mxu0 0
        %988 = vmatprep.subr.bf16.mxu0 0
        %989 = vmatpush1.bf16.xpose.msra.mxu0 0
        %990 = vmatprep.subr.bf16.mxu0 0
        %991 = vmatpush1.bf16.xpose.msra.mxu0 0
        %992 = vmatprep.mubr.bf16.mxu0 0
        %993 = vmatmul.mubr.bf16.gmra.mrb[0].mxu0 %v955
        %v994 = vpop.f32.mrb[0].mxu0
        %v995 = vadd.f32 0.0, %v994
        %v996 = vpop.f32.mrb[0].mxu0
        %v997 = vpop.f32.mrb[0].mxu0
        %v998 = vadd.f32 0.0, %v997
        %v999 = vpop.f32.mrb[0].mxu0
        %1000 = vdwg.mxu0
        %v1001 = vld [vmem:[#allocation3] sm:$0xff]
        %v1002 = vld [vmem:[#allocation3 + $0x8] sm:$0xff]
        %vm1003 = vcmask 130048
        %v1004 = vsel %vm1003, %v995, -inf
        %1005 = vmax.xlane.f32.xlu0 %v1004
        %v1006 = vpop.xlane.xlu0 %1005
        %v1007 = vsel %vm1003, %v998, -inf
        %1008 = vmax.xlane.f32.xlu0 %v1007
        %v1009 = vpop.xlane.xlu0 %1008
        %v1010 = vmax.f32 %v1001, %v1006
        %v1011 = vmax.f32 %v1002, %v1009
        %v1012 = vsub.f32 %v1001, %v1010
        %v1013 = vsub.f32 %v1002, %v1011
        %v1014 = vmul.f32 %v1012, 1.442695
        %v1015 = vpow.pop %v1014
        %v1016 = vmul.f32 %v1013, 1.442695
        %v1017 = vpow.pop %v1016
        %1019 = vset.pattern.permute.xlu0 0
        %1020 = vperm.xlu0 %1019, %v1010
        %v1021 = vpop.permute.xlu0 %1020
        %1024 = vset.pattern.permute.xlu0 0
        %1025 = vperm.xlu0 %1024, %v1011
        %v1026 = vpop.permute.xlu0 %1025
        %v1028 = vsub.f32 %v995, %v1021
        %v1029 = vsub.f32 %v998, %v1026
        %v1030 = vmul.f32 %v1028, 1.442695
        %v1031 = vpow.pop %v1030
        %v1032 = vmul.f32 %v1029, 1.442695
        %v1033 = vpow.pop %v1032
        %v1034 = vld [vmem:[#allocation4] sm:$0xff]
        %v1035 = vld [vmem:[#allocation4 + $0x8] sm:$0xff]
        %v1036 = vmul.f32 %v1015, %v1034
        %v1037 = vmul.f32 %v1017, %v1035
        %v1038 = vsel %vm1003, %v1031, 0.0
        %1039 = vadd.xlane.f32.xlu0 %v1038
        %v1040 = vpop.xlane.xlu0 %1039
        %v1041 = vsel %vm1003, %v1033, 0.0
        %1042 = vadd.xlane.f32.xlu0 %v1041
        %v1043 = vpop.xlane.xlu0 %1042
        %v1044 = vadd.f32 %v1036, %v1040
        %v1045 = vadd.f32 %v1037, %v1043
        %vm1046 = vcmask 7168
        %1047 = vst.msk [vmem:[#allocation4] sm:$0xff] %vm1046, %v1044
        %1048 = vst.msk [vmem:[#allocation4 + $0x8] sm:$0xff] %vm1046, %v1045
        %v1049 = vld [vmem:[#allocation5] sm:$0xff]
        %v1050 = vld [vmem:[#allocation5 + $0x8] sm:$0xff]
        %1052 = vset.pattern.permute.xlu0 0
        %1053 = vperm.xlu0 %1052, %v1015
        %v1054 = vpop.permute.xlu0 %1053
        %1057 = vset.pattern.permute.xlu0 0
        %1058 = vperm.xlu0 %1057, %v1017
        %v1059 = vpop.permute.xlu0 %1058
        %v1061 = vmul.f32 %v1054, %v1049
        %v1062 = vmul.f32 %v1059, %v1050
        %v1063 = vpack.c.bf16 %v1033, %v1031
        %v1065 = vsel %vm1003, %v1063, 0
        %1067 = vmatprep.subr.bf16.mxu0 0
        %1068 = vmatpush1.bf16.msra.mxu0 %v951
        %1069 = vmatprep.subr.bf16.mxu0 0
        %1070 = vmatpush1.bf16.msra.mxu0 0
        %1071 = vmatprep.subr.bf16.mxu0 0
        %1072 = vmatpush1.bf16.msra.mxu0 0
        %1073 = vmatprep.subr.bf16.mxu0 0
        %1074 = vmatpush1.bf16.msra.mxu0 0
        %1075 = vmatprep.subr.bf16.mxu0 0
        %1076 = vmatpush1.bf16.msra.mxu0 0
        %1077 = vmatprep.subr.bf16.mxu0 0
        %1078 = vmatpush1.bf16.msra.mxu0 0
        %1079 = vmatprep.subr.bf16.mxu0 0
        %1080 = vmatpush1.bf16.msra.mxu0 0
        %1081 = vmatprep.subr.bf16.mxu0 0
        %1082 = vmatpush1.bf16.msra.mxu0 0
        %1083 = vmatprep.subr.bf16.mxu0 0
        %1084 = vmatpush1.bf16.msra.mxu0 0
        %1085 = vmatprep.subr.bf16.mxu0 0
        %1086 = vmatpush1.bf16.msra.mxu0 0
        %1087 = vmatprep.subr.bf16.mxu0 0
        %1088 = vmatpush1.bf16.msra.mxu0 0
        %1089 = vmatprep.subr.bf16.mxu0 0
        %1090 = vmatpush1.bf16.msra.mxu0 0
        %1091 = vmatprep.subr.bf16.mxu0 0
        %1092 = vmatpush1.bf16.msra.mxu0 0
        %1093 = vmatprep.subr.bf16.mxu0 0
        %1094 = vmatpush1.bf16.msra.mxu0 0
        %1095 = vmatprep.subr.bf16.mxu0 0
        %1096 = vmatpush1.bf16.msra.mxu0 0
        %1097 = vmatprep.subr.bf16.mxu0 0
        %1098 = vmatpush1.bf16.msra.mxu0 0
        %1099 = vmatprep.mubr.bf16.mxu0 0
        %1100 = vmatmul.mubr.bf16.gmra.mrb[0].mxu0 %v1065
        %v1101 = vpop.f32.mrb[0].mxu0
        %v1102 = vadd.f32 0.0, %v1101
        %v1103 = vpop.f32.mrb[0].mxu0
        %v1104 = vpop.f32.mrb[0].mxu0
        %v1105 = vadd.f32 0.0, %v1104
        %v1106 = vpop.f32.mrb[0].mxu0
        %1107 = vdwg.mxu0
        %v1108 = vadd.f32 %v1061, %v1102
        %v1109 = vadd.f32 %v1062, %v1105
        %1110 = vst.msk [vmem:[#allocation5] sm:$0xff] %vm953, %v1108
        %1111 = vst.msk [vmem:[#allocation5 + $0x8] sm:$0xff] %vm953, %v1109
        %1112 = vst.msk [vmem:[#allocation3] sm:$0xff] %vm1046, %v1010
        %1113 = vst.msk [vmem:[#allocation3 + $0x8] sm:$0xff] %vm1046, %v1011
        %v1114 = vld [vmem:[#allocation2] sm:$0xff]
        %1116 = vrot.lane.b32.xlu0 %v1114, 96
        %v1117 = vpop.permute.xlu0 %1116
        %1119 = vrot.lane.b32.xlu0 %v950, 96
        %v1120 = vpop.permute.xlu0 %1119
        %v1122 = vsel %vm953, %v1117, 0
        %v1125 = vsel %vm953, %v1120, 0
        %1127 = vmatprep.subr.bf16.mxu0 0
        %1128 = vmatpush1.bf16.xpose.msra.mxu0 %v1125
        %1129 = vmatprep.subr.bf16.mxu0 0
        %1130 = vmatpush1.bf16.xpose.msra.mxu0 0
        %1131 = vmatprep.subr.bf16.mxu0 0
        %1132 = vmatpush1.bf16.xpose.msra.mxu0 0
        %1133 = vmatprep.subr.bf16.mxu0 0
        %1134 = vmatpush1.bf16.xpose.msra.mxu0 0
        %1135 = vmatprep.subr.bf16.mxu0 0
        %1136 = vmatpush1.bf16.xpose.msra.mxu0 0
        %1137 = vmatprep.subr.bf16.mxu0 0
        %1138 = vmatpush1.bf16.xpose.msra.mxu0 0
        %1139 = vmatprep.subr.bf16.mxu0 0
        %1140 = vmatpush1.bf16.xpose.msra.mxu0 0
        %1141 = vmatprep.subr.bf16.mxu0 0
        %1142 = vmatpush1.bf16.xpose.msra.mxu0 0
        %1143 = vmatprep.subr.bf16.mxu0 0
        %1144 = vmatpush1.bf16.xpose.msra.mxu0 0
        %1145 = vmatprep.subr.bf16.mxu0 0
        %1146 = vmatpush1.bf16.xpose.msra.mxu0 0
        %1147 = vmatprep.subr.bf16.mxu0 0
        %1148 = vmatpush1.bf16.xpose.msra.mxu0 0
        %1149 = vmatprep.subr.bf16.mxu0 0
        %1150 = vmatpush1.bf16.xpose.msra.mxu0 0
        %1151 = vmatprep.subr.bf16.mxu0 0
        %1152 = vmatpush1.bf16.xpose.msra.mxu0 0
        %1153 = vmatprep.subr.bf16.mxu0 0
        %1154 = vmatpush1.bf16.xpose.msra.mxu0 0
        %1155 = vmatprep.subr.bf16.mxu0 0
        %1156 = vmatpush1.bf16.xpose.msra.mxu0 0
        %1157 = vmatprep.subr.bf16.mxu0 0
        %1158 = vmatpush1.bf16.xpose.msra.mxu0 0
        %1159 = vmatprep.mubr.bf16.mxu0 0
        %1160 = vmatmul.mubr.bf16.gmra.mrb[0].mxu0 %v1122
        %v1161 = vpop.f32.mrb[0].mxu0
        %v1162 = vadd.f32 0.0, %v1161
        %v1163 = vpop.f32.mrb[0].mxu0
        %v1164 = vpop.f32.mrb[0].mxu0
        %v1165 = vadd.f32 0.0, %v1164
        %v1166 = vpop.f32.mrb[0].mxu0
        %1167 = vdwg.mxu0
        %s1168 = scalar_lea.vmem [#allocation3], 16
        %v1169 = vld [vmem:[%s1168] sm:$0xff]
        %v1170 = vld [vmem:[%s1168 + $0x8] sm:$0xff]
        %v1171 = vsel %vm1003, %v1162, -inf
        %1172 = vmax.xlane.f32.xlu0 %v1171
        %v1173 = vpop.xlane.xlu0 %1172
        %v1174 = vsel %vm1003, %v1165, -inf
        %1175 = vmax.xlane.f32.xlu0 %v1174
        %v1176 = vpop.xlane.xlu0 %1175
        %v1177 = vmax.f32 %v1169, %v1173
        %v1178 = vmax.f32 %v1170, %v1176
        %v1179 = vsub.f32 %v1169, %v1177
        %v1180 = vsub.f32 %v1170, %v1178
        %v1181 = vmul.f32 %v1179, 1.442695
        %v1182 = vpow.pop %v1181
        %v1183 = vmul.f32 %v1180, 1.442695
        %v1184 = vpow.pop %v1183
        %1186 = vset.pattern.permute.xlu0 0
        %1187 = vperm.xlu0 %1186, %v1177
        %v1188 = vpop.permute.xlu0 %1187
        %1191 = vset.pattern.permute.xlu0 0
        %1192 = vperm.xlu0 %1191, %v1178
        %v1193 = vpop.permute.xlu0 %1192
        %v1195 = vsub.f32 %v1162, %v1188
        %v1196 = vsub.f32 %v1165, %v1193
        %v1197 = vmul.f32 %v1195, 1.442695
        %v1198 = vpow.pop %v1197
        %v1199 = vmul.f32 %v1196, 1.442695
        %v1200 = vpow.pop %v1199
        %s1201 = scalar_lea.vmem [#allocation4], 16
        %v1202 = vld [vmem:[%s1201] sm:$0xff]
        %v1203 = vld [vmem:[%s1201 + $0x8] sm:$0xff]
        %v1204 = vmul.f32 %v1182, %v1202
        %v1205 = vmul.f32 %v1184, %v1203
        %v1206 = vsel %vm1003, %v1198, 0.0
        %1207 = vadd.xlane.f32.xlu0 %v1206
        %v1208 = vpop.xlane.xlu0 %1207
        %v1209 = vsel %vm1003, %v1200, 0.0
        %1210 = vadd.xlane.f32.xlu0 %v1209
        %v1211 = vpop.xlane.xlu0 %1210
        %v1212 = vadd.f32 %v1204, %v1208
        %v1213 = vadd.f32 %v1205, %v1211
        %1214 = vst.msk [vmem:[%s1201] sm:$0xff] %vm1046, %v1212
        %1215 = vst.msk [vmem:[%s1201 + $0x8] sm:$0xff] %vm1046, %v1213
        %v1216 = vld [vmem:[#allocation5] sm:$0xff]
        %v1217 = vld [vmem:[#allocation5 + $0x8] sm:$0xff]
        %1219 = vset.pattern.permute.xlu0 0
        %1220 = vperm.xlu0 %1219, %v1182
        %v1221 = vpop.permute.xlu0 %1220
        %1224 = vset.pattern.permute.xlu0 0
        %1225 = vperm.xlu0 %1224, %v1184
        %v1226 = vpop.permute.xlu0 %1225
        %v1228 = vmul.f32 %v1221, %v1216
        %v1229 = vmul.f32 %v1226, %v1217
        %v1230 = vpack.c.bf16 %v1200, %v1198
        %1232 = vrot.lane.b32.xlu0 %v951, 96
        %v1233 = vpop.permute.xlu0 %1232
        %v1236 = vsel %vm1003, %v1230, 0
        %1238 = vmatprep.subr.bf16.mxu0 0
        %1239 = vmatpush1.bf16.msra.mxu0 %v1233
        %1240 = vmatprep.subr.bf16.mxu0 0
        %1241 = vmatpush1.bf16.msra.mxu0 0
        %1242 = vmatprep.subr.bf16.mxu0 0
        %1243 = vmatpush1.bf16.msra.mxu0 0
        %1244 = vmatprep.subr.bf16.mxu0 0
        %1245 = vmatpush1.bf16.msra.mxu0 0
        %1246 = vmatprep.subr.bf16.mxu0 0
        %1247 = vmatpush1.bf16.msra.mxu0 0
        %1248 = vmatprep.subr.bf16.mxu0 0
        %1249 = vmatpush1.bf16.msra.mxu0 0
        %1250 = vmatprep.subr.bf16.mxu0 0
        %1251 = vmatpush1.bf16.msra.mxu0 0
        %1252 = vmatprep.subr.bf16.mxu0 0
        %1253 = vmatpush1.bf16.msra.mxu0 0
        %1254 = vmatprep.subr.bf16.mxu0 0
        %1255 = vmatpush1.bf16.msra.mxu0 0
        %1256 = vmatprep.subr.bf16.mxu0 0
        %1257 = vmatpush1.bf16.msra.mxu0 0
        %1258 = vmatprep.subr.bf16.mxu0 0
        %1259 = vmatpush1.bf16.msra.mxu0 0
        %1260 = vmatprep.subr.bf16.mxu0 0
        %1261 = vmatpush1.bf16.msra.mxu0 0
        %1262 = vmatprep.subr.bf16.mxu0 0
        %1263 = vmatpush1.bf16.msra.mxu0 0
        %1264 = vmatprep.subr.bf16.mxu0 0
        %1265 = vmatpush1.bf16.msra.mxu0 0
        %1266 = vmatprep.subr.bf16.mxu0 0
        %1267 = vmatpush1.bf16.msra.mxu0 0
        %1268 = vmatprep.subr.bf16.mxu0 0
        %1269 = vmatpush1.bf16.msra.mxu0 0
        %1270 = vmatprep.mubr.bf16.mxu0 0
        %1271 = vmatmul.mubr.bf16.gmra.mrb[0].mxu0 %v1236
        %v1272 = vpop.f32.mrb[0].mxu0
        %v1273 = vadd.f32 0.0, %v1272
        %v1274 = vpop.f32.mrb[0].mxu0
        %v1275 = vpop.f32.mrb[0].mxu0
        %v1276 = vadd.f32 0.0, %v1275
        %v1277 = vpop.f32.mrb[0].mxu0
        %1278 = vdwg.mxu0
        %1281 = vrot.lane.b32.xlu0 %v1273, 32
        %v1282 = vpop.permute.xlu0 %1281
        %1283 = vrot.lane.b32.xlu0 %v1276, 32
        %v1284 = vpop.permute.xlu0 %1283
        %v1287 = vadd.f32 %v1228, %v1282
        %v1288 = vadd.f32 %v1229, %v1284
        %vm1289 = vcmask 523520
        %1290 = vst.msk [vmem:[#allocation5] sm:$0xff] %vm1289, %v1287
        %1291 = vst.msk [vmem:[#allocation5 + $0x8] sm:$0xff] %vm1289, %v1288
        %1292 = vst.msk [vmem:[%s1168] sm:$0xff] %vm1046, %v1177
        %1293 = vst.msk [vmem:[%s1168 + $0x8] sm:$0xff] %vm1046, %v1178
        %v1294 = vld [vmem:[#allocation2] sm:$0xff]
        %1296 = vrot.lane.b32.xlu0 %v1294, 64
        %v1297 = vpop.permute.xlu0 %1296
        %1298 = vrot.lane.b32.xlu0 %v950, 64
        %v1299 = vpop.permute.xlu0 %1298
        %v1301 = vsel %vm953, %v1297, 0
        %v1304 = vsel %vm953, %v1299, 0
        %1306 = vmatprep.subr.bf16.mxu0 0
        %1307 = vmatpush1.bf16.xpose.msra.mxu0 %v1304
        %1308 = vmatprep.subr.bf16.mxu0 0
        %1309 = vmatpush1.bf16.xpose.msra.mxu0 0
        %1310 = vmatprep.subr.bf16.mxu0 0
        %1311 = vmatpush1.bf16.xpose.msra.mxu0 0
        %1312 = vmatprep.subr.bf16.mxu0 0
        %1313 = vmatpush1.bf16.xpose.msra.mxu0 0
        %1314 = vmatprep.subr.bf16.mxu0 0
        %1315 = vmatpush1.bf16.xpose.msra.mxu0 0
        %1316 = vmatprep.subr.bf16.mxu0 0
        %1317 = vmatpush1.bf16.xpose.msra.mxu0 0
        %1318 = vmatprep.subr.bf16.mxu0 0
        %1319 = vmatpush1.bf16.xpose.msra.mxu0 0
        %1320 = vmatprep.subr.bf16.mxu0 0
        %1321 = vmatpush1.bf16.xpose.msra.mxu0 0
        %1322 = vmatprep.subr.bf16.mxu0 0
        %1323 = vmatpush1.bf16.xpose.msra.mxu0 0
        %1324 = vmatprep.subr.bf16.mxu0 0
        %1325 = vmatpush1.bf16.xpose.msra.mxu0 0
        %1326 = vmatprep.subr.bf16.mxu0 0
        %1327 = vmatpush1.bf16.xpose.msra.mxu0 0
        %1328 = vmatprep.subr.bf16.mxu0 0
        %1329 = vmatpush1.bf16.xpose.msra.mxu0 0
        %1330 = vmatprep.subr.bf16.mxu0 0
        %1331 = vmatpush1.bf16.xpose.msra.mxu0 0
        %1332 = vmatprep.subr.bf16.mxu0 0
        %1333 = vmatpush1.bf16.xpose.msra.mxu0 0
        %1334 = vmatprep.subr.bf16.mxu0 0
        %1335 = vmatpush1.bf16.xpose.msra.mxu0 0
        %1336 = vmatprep.subr.bf16.mxu0 0
        %1337 = vmatpush1.bf16.xpose.msra.mxu0 0
        %1338 = vmatprep.mubr.bf16.mxu0 0
        %1339 = vmatmul.mubr.bf16.gmra.mrb[0].mxu0 %v1301
        %v1340 = vpop.f32.mrb[0].mxu0
        %v1341 = vadd.f32 0.0, %v1340
        %v1342 = vpop.f32.mrb[0].mxu0
        %v1343 = vpop.f32.mrb[0].mxu0
        %v1344 = vadd.f32 0.0, %v1343
        %v1345 = vpop.f32.mrb[0].mxu0
        %1346 = vdwg.mxu0
        %s1347 = scalar_lea.vmem [#allocation3], 32
        %v1348 = vld [vmem:[%s1347] sm:$0xff]
        %v1349 = vld [vmem:[%s1347 + $0x8] sm:$0xff]
        %v1350 = vsel %vm1003, %v1341, -inf
        %1351 = vmax.xlane.f32.xlu0 %v1350
        %v1352 = vpop.xlane.xlu0 %1351
        %v1353 = vsel %vm1003, %v1344, -inf
        %1354 = vmax.xlane.f32.xlu0 %v1353
        %v1355 = vpop.xlane.xlu0 %1354
        %v1356 = vmax.f32 %v1348, %v1352
        %v1357 = vmax.f32 %v1349, %v1355
        %v1358 = vsub.f32 %v1348, %v1356
        %v1359 = vsub.f32 %v1349, %v1357
        %v1360 = vmul.f32 %v1358, 1.442695
        %v1361 = vpow.pop %v1360
        %v1362 = vmul.f32 %v1359, 1.442695
        %v1363 = vpow.pop %v1362
        %1365 = vset.pattern.permute.xlu0 0
        %1366 = vperm.xlu0 %1365, %v1356
        %v1367 = vpop.permute.xlu0 %1366
        %1370 = vset.pattern.permute.xlu0 0
        %1371 = vperm.xlu0 %1370, %v1357
        %v1372 = vpop.permute.xlu0 %1371
        %v1374 = vsub.f32 %v1341, %v1367
        %v1375 = vsub.f32 %v1344, %v1372
        %v1376 = vmul.f32 %v1374, 1.442695
        %v1377 = vpow.pop %v1376
        %v1378 = vmul.f32 %v1375, 1.442695
        %v1379 = vpow.pop %v1378
        %s1380 = scalar_lea.vmem [#allocation4], 32
        %v1381 = vld [vmem:[%s1380] sm:$0xff]
        %v1382 = vld [vmem:[%s1380 + $0x8] sm:$0xff]
        %v1383 = vmul.f32 %v1361, %v1381
        %v1384 = vmul.f32 %v1363, %v1382
        %v1385 = vsel %vm1003, %v1377, 0.0
        %1386 = vadd.xlane.f32.xlu0 %v1385
        %v1387 = vpop.xlane.xlu0 %1386
        %v1388 = vsel %vm1003, %v1379, 0.0
        %1389 = vadd.xlane.f32.xlu0 %v1388
        %v1390 = vpop.xlane.xlu0 %1389
        %v1391 = vadd.f32 %v1383, %v1387
        %v1392 = vadd.f32 %v1384, %v1390
        %1393 = vst.msk [vmem:[%s1380] sm:$0xff] %vm1046, %v1391
        %1394 = vst.msk [vmem:[%s1380 + $0x8] sm:$0xff] %vm1046, %v1392
        %v1395 = vld [vmem:[#allocation5] sm:$0xff]
        %v1396 = vld [vmem:[#allocation5 + $0x8] sm:$0xff]
        %1398 = vset.pattern.permute.xlu0 0
        %1399 = vperm.xlu0 %1398, %v1361
        %v1400 = vpop.permute.xlu0 %1399
        %1403 = vset.pattern.permute.xlu0 0
        %1404 = vperm.xlu0 %1403, %v1363
        %v1405 = vpop.permute.xlu0 %1404
        %v1407 = vmul.f32 %v1400, %v1395
        %v1408 = vmul.f32 %v1405, %v1396
        %v1409 = vpack.c.bf16 %v1379, %v1377
        %1410 = vrot.lane.b32.xlu0 %v951, 64
        %v1411 = vpop.permute.xlu0 %1410
        %v1414 = vsel %vm1003, %v1409, 0
        %1416 = vmatprep.subr.bf16.mxu0 0
        %1417 = vmatpush1.bf16.msra.mxu0 %v1411
        %1418 = vmatprep.subr.bf16.mxu0 0
        %1419 = vmatpush1.bf16.msra.mxu0 0
        %1420 = vmatprep.subr.bf16.mxu0 0
        %1421 = vmatpush1.bf16.msra.mxu0 0
        %1422 = vmatprep.subr.bf16.mxu0 0
        %1423 = vmatpush1.bf16.msra.mxu0 0
        %1424 = vmatprep.subr.bf16.mxu0 0
        %1425 = vmatpush1.bf16.msra.mxu0 0
        %1426 = vmatprep.subr.bf16.mxu0 0
        %1427 = vmatpush1.bf16.msra.mxu0 0
        %1428 = vmatprep.subr.bf16.mxu0 0
        %1429 = vmatpush1.bf16.msra.mxu0 0
        %1430 = vmatprep.subr.bf16.mxu0 0
        %1431 = vmatpush1.bf16.msra.mxu0 0
        %1432 = vmatprep.subr.bf16.mxu0 0
        %1433 = vmatpush1.bf16.msra.mxu0 0
        %1434 = vmatprep.subr.bf16.mxu0 0
        %1435 = vmatpush1.bf16.msra.mxu0 0
        %1436 = vmatprep.subr.bf16.mxu0 0
        %1437 = vmatpush1.bf16.msra.mxu0 0
        %1438 = vmatprep.subr.bf16.mxu0 0
        %1439 = vmatpush1.bf16.msra.mxu0 0
        %1440 = vmatprep.subr.bf16.mxu0 0
        %1441 = vmatpush1.bf16.msra.mxu0 0
        %1442 = vmatprep.subr.bf16.mxu0 0
        %1443 = vmatpush1.bf16.msra.mxu0 0
        %1444 = vmatprep.subr.bf16.mxu0 0
        %1445 = vmatpush1.bf16.msra.mxu0 0
        %1446 = vmatprep.subr.bf16.mxu0 0
        %1447 = vmatpush1.bf16.msra.mxu0 0
        %1448 = vmatprep.mubr.bf16.mxu0 0
        %1449 = vmatmul.mubr.bf16.gmra.mrb[0].mxu0 %v1414
        %v1450 = vpop.f32.mrb[0].mxu0
        %v1451 = vadd.f32 0.0, %v1450
        %v1452 = vpop.f32.mrb[0].mxu0
        %v1453 = vpop.f32.mrb[0].mxu0
        %v1454 = vadd.f32 0.0, %v1453
        %v1455 = vpop.f32.mrb[0].mxu0
        %1456 = vdwg.mxu0
        %1459 = vrot.lane.b32.xlu0 %v1451, 64
        %v1460 = vpop.permute.xlu0 %1459
        %1461 = vrot.lane.b32.xlu0 %v1454, 64
        %v1462 = vpop.permute.xlu0 %1461
        %v1465 = vadd.f32 %v1407, %v1460
        %v1466 = vadd.f32 %v1408, %v1462
        %vm1467 = vcmask 785920
        %1468 = vst.msk [vmem:[#allocation5] sm:$0xff] %vm1467, %v1465
        %1469 = vst.msk [vmem:[#allocation5 + $0x8] sm:$0xff] %vm1467, %v1466
        %1470 = vst.msk [vmem:[%s1347] sm:$0xff] %vm1046, %v1356
        %1471 = vst.msk [vmem:[%s1347 + $0x8] sm:$0xff] %vm1046, %v1357
        %v1472 = vld [vmem:[#allocation2] sm:$0xff]
        %1474 = vrot.lane.b32.xlu0 %v1472, 32
        %v1475 = vpop.permute.xlu0 %1474
        %1476 = vrot.lane.b32.xlu0 %v950, 32
        %v1477 = vpop.permute.xlu0 %1476
        %v1479 = vsel %vm953, %v1475, 0
        %v1482 = vsel %vm953, %v1477, 0
        %1484 = vmatprep.subr.bf16.mxu0 0
        %1485 = vmatpush1.bf16.xpose.msra.mxu0 %v1482
        %1486 = vmatprep.subr.bf16.mxu0 0
        %1487 = vmatpush1.bf16.xpose.msra.mxu0 0
        %1488 = vmatprep.subr.bf16.mxu0 0
        %1489 = vmatpush1.bf16.xpose.msra.mxu0 0
        %1490 = vmatprep.subr.bf16.mxu0 0
        %1491 = vmatpush1.bf16.xpose.msra.mxu0 0
        %1492 = vmatprep.subr.bf16.mxu0 0
        %1493 = vmatpush1.bf16.xpose.msra.mxu0 0
        %1494 = vmatprep.subr.bf16.mxu0 0
        %1495 = vmatpush1.bf16.xpose.msra.mxu0 0
        %1496 = vmatprep.subr.bf16.mxu0 0
        %1497 = vmatpush1.bf16.xpose.msra.mxu0 0
        %1498 = vmatprep.subr.bf16.mxu0 0
        %1499 = vmatpush1.bf16.xpose.msra.mxu0 0
        %1500 = vmatprep.subr.bf16.mxu0 0
        %1501 = vmatpush1.bf16.xpose.msra.mxu0 0
        %1502 = vmatprep.subr.bf16.mxu0 0
        %1503 = vmatpush1.bf16.xpose.msra.mxu0 0
        %1504 = vmatprep.subr.bf16.mxu0 0
        %1505 = vmatpush1.bf16.xpose.msra.mxu0 0
        %1506 = vmatprep.subr.bf16.mxu0 0
        %1507 = vmatpush1.bf16.xpose.msra.mxu0 0
        %1508 = vmatprep.subr.bf16.mxu0 0
        %1509 = vmatpush1.bf16.xpose.msra.mxu0 0
        %1510 = vmatprep.subr.bf16.mxu0 0
        %1511 = vmatpush1.bf16.xpose.msra.mxu0 0
        %1512 = vmatprep.subr.bf16.mxu0 0
        %1513 = vmatpush1.bf16.xpose.msra.mxu0 0
        %1514 = vmatprep.subr.bf16.mxu0 0
        %1515 = vmatpush1.bf16.xpose.msra.mxu0 0
        %1516 = vmatprep.mubr.bf16.mxu0 0
        %1517 = vmatmul.mubr.bf16.gmra.mrb[0].mxu0 %v1479
        %v1518 = vpop.f32.mrb[0].mxu0
        %v1519 = vadd.f32 0.0, %v1518
        %v1520 = vpop.f32.mrb[0].mxu0
        %v1521 = vpop.f32.mrb[0].mxu0
        %v1522 = vadd.f32 0.0, %v1521
        %v1523 = vpop.f32.mrb[0].mxu0
        %1524 = vdwg.mxu0
        %s1525 = scalar_lea.vmem [#allocation3], 48
        %v1526 = vld [vmem:[%s1525] sm:$0xff]
        %v1527 = vld [vmem:[%s1525 + $0x8] sm:$0xff]
        %v1528 = vsel %vm1003, %v1519, -inf
        %1529 = vmax.xlane.f32.xlu0 %v1528
        %v1530 = vpop.xlane.xlu0 %1529
        %v1531 = vsel %vm1003, %v1522, -inf
        %1532 = vmax.xlane.f32.xlu0 %v1531
        %v1533 = vpop.xlane.xlu0 %1532
        %v1534 = vmax.f32 %v1526, %v1530
        %v1535 = vmax.f32 %v1527, %v1533
        %v1536 = vsub.f32 %v1526, %v1534
        %v1537 = vsub.f32 %v1527, %v1535
        %v1538 = vmul.f32 %v1536, 1.442695
        %v1539 = vpow.pop %v1538
        %v1540 = vmul.f32 %v1537, 1.442695
        %v1541 = vpow.pop %v1540
        %1543 = vset.pattern.permute.xlu0 0
        %1544 = vperm.xlu0 %1543, %v1534
        %v1545 = vpop.permute.xlu0 %1544
        %1548 = vset.pattern.permute.xlu0 0
        %1549 = vperm.xlu0 %1548, %v1535
        %v1550 = vpop.permute.xlu0 %1549
        %v1552 = vsub.f32 %v1519, %v1545
        %v1553 = vsub.f32 %v1522, %v1550
        %v1554 = vmul.f32 %v1552, 1.442695
        %v1555 = vpow.pop %v1554
        %v1556 = vmul.f32 %v1553, 1.442695
        %v1557 = vpow.pop %v1556
        %s1558 = scalar_lea.vmem [#allocation4], 48
        %v1559 = vld [vmem:[%s1558] sm:$0xff]
        %v1560 = vld [vmem:[%s1558 + $0x8] sm:$0xff]
        %v1561 = vmul.f32 %v1539, %v1559
        %v1562 = vmul.f32 %v1541, %v1560
        %v1563 = vsel %vm1003, %v1555, 0.0
        %1564 = vadd.xlane.f32.xlu0 %v1563
        %v1565 = vpop.xlane.xlu0 %1564
        %v1566 = vsel %vm1003, %v1557, 0.0
        %1567 = vadd.xlane.f32.xlu0 %v1566
        %v1568 = vpop.xlane.xlu0 %1567
        %v1569 = vadd.f32 %v1561, %v1565
        %v1570 = vadd.f32 %v1562, %v1568
        %1571 = vst.msk [vmem:[%s1558] sm:$0xff] %vm1046, %v1569
        %1572 = vst.msk [vmem:[%s1558 + $0x8] sm:$0xff] %vm1046, %v1570
        %v1573 = vld [vmem:[#allocation5] sm:$0xff]
        %v1574 = vld [vmem:[#allocation5 + $0x8] sm:$0xff]
        %1576 = vset.pattern.permute.xlu0 0
        %1577 = vperm.xlu0 %1576, %v1539
        %v1578 = vpop.permute.xlu0 %1577
        %1581 = vset.pattern.permute.xlu0 0
        %1582 = vperm.xlu0 %1581, %v1541
        %v1583 = vpop.permute.xlu0 %1582
        %v1585 = vmul.f32 %v1578, %v1573
        %v1586 = vmul.f32 %v1583, %v1574
        %v1587 = vpack.c.bf16 %v1557, %v1555
        %1588 = vrot.lane.b32.xlu0 %v951, 32
        %v1589 = vpop.permute.xlu0 %1588
        %v1592 = vsel %vm1003, %v1587, 0
        %1594 = vmatprep.subr.bf16.mxu0 0
        %1595 = vmatpush1.bf16.msra.mxu0 %v1589
        %1596 = vmatprep.subr.bf16.mxu0 0
        %1597 = vmatpush1.bf16.msra.mxu0 0
        %1598 = vmatprep.subr.bf16.mxu0 0
        %1599 = vmatpush1.bf16.msra.mxu0 0
        %1600 = vmatprep.subr.bf16.mxu0 0
        %1601 = vmatpush1.bf16.msra.mxu0 0
        %1602 = vmatprep.subr.bf16.mxu0 0
        %1603 = vmatpush1.bf16.msra.mxu0 0
        %1604 = vmatprep.subr.bf16.mxu0 0
        %1605 = vmatpush1.bf16.msra.mxu0 0
        %1606 = vmatprep.subr.bf16.mxu0 0
        %1607 = vmatpush1.bf16.msra.mxu0 0
        %1608 = vmatprep.subr.bf16.mxu0 0
        %1609 = vmatpush1.bf16.msra.mxu0 0
        %1610 = vmatprep.subr.bf16.mxu0 0
        %1611 = vmatpush1.bf16.msra.mxu0 0
        %1612 = vmatprep.subr.bf16.mxu0 0
        %1613 = vmatpush1.bf16.msra.mxu0 0
        %1614 = vmatprep.subr.bf16.mxu0 0
        %1615 = vmatpush1.bf16.msra.mxu0 0
        %1616 = vmatprep.subr.bf16.mxu0 0
        %1617 = vmatpush1.bf16.msra.mxu0 0
        %1618 = vmatprep.subr.bf16.mxu0 0
        %1619 = vmatpush1.bf16.msra.mxu0 0
        %1620 = vmatprep.subr.bf16.mxu0 0
        %1621 = vmatpush1.bf16.msra.mxu0 0
        %1622 = vmatprep.subr.bf16.mxu0 0
        %1623 = vmatpush1.bf16.msra.mxu0 0
        %1624 = vmatprep.subr.bf16.mxu0 0
        %1625 = vmatpush1.bf16.msra.mxu0 0
        %1626 = vmatprep.mubr.bf16.mxu0 0
        %1627 = vmatmul.mubr.bf16.gmra.mrb[0].mxu0 %v1592
        %v1628 = vpop.f32.mrb[0].mxu0
        %v1629 = vadd.f32 0.0, %v1628
        %v1630 = vpop.f32.mrb[0].mxu0
        %v1631 = vpop.f32.mrb[0].mxu0
        %v1632 = vadd.f32 0.0, %v1631
        %v1633 = vpop.f32.mrb[0].mxu0
        %1634 = vdwg.mxu0
        %1637 = vrot.lane.b32.xlu0 %v1629, 96
        %v1638 = vpop.permute.xlu0 %1637
        %1639 = vrot.lane.b32.xlu0 %v1632, 96
        %v1640 = vpop.permute.xlu0 %1639
        %v1643 = vadd.f32 %v1585, %v1638
        %v1644 = vadd.f32 %v1586, %v1640
        %vm1645 = vcmask 1048320
        %1646 = vst.msk [vmem:[#allocation5] sm:$0xff] %vm1645, %v1643
        %1647 = vst.msk [vmem:[#allocation5 + $0x8] sm:$0xff] %vm1645, %v1644
        %1648 = vst.msk [vmem:[%s1525] sm:$0xff] %vm1046, %v1534
        %1649 = vst.msk [vmem:[%s1525 + $0x8] sm:$0xff] %vm1046, %v1535
        %p1650 = scmp.eq.s32.totalorder %s40, 1
        // Predicated region
        $region97: #{tpu_custom_call.1} parent=63 // pred_check
          %p1651 = pneg %p1650
        $region98: #{tpu_custom_call.1} parent=63 // pred_check_branch
          %1653 = sbr.rel (%p1651) target = $region100
        $region99: #{tpu_custom_call.1} parent=63 // pred_region
          %v1654 = vld [vmem:[#allocation4] sm:$0xff]
          %v1655 = vld [vmem:[#allocation4 + $0x8] sm:$0xff]
          %v1656 = vrcp.pop %v1654
          %v1657 = vrcp.pop %v1655
          %v1658 = vld [vmem:[#allocation5] sm:$0xff]
          %v1659 = vld [vmem:[#allocation5 + $0x8] sm:$0xff]
          %1661 = vset.pattern.permute.xlu0 0
          %1662 = vperm.xlu0 %1661, %v1656
          %v1663 = vpop.permute.xlu0 %1662
          %1666 = vset.pattern.permute.xlu0 0
          %1667 = vperm.xlu0 %1666, %v1657
          %v1668 = vpop.permute.xlu0 %1667
          %v1670 = vmul.f32 %v1658, %v1663
          %v1671 = vmul.f32 %v1659, %v1668
          %1672 = vst.msk [vmem:[#allocation5] sm:$0xff] %vm953, %v1670
          %1673 = vst.msk [vmem:[#allocation5 + $0x8] sm:$0xff] %vm953, %v1671
          %v1674 = vld [vmem:[%s1201] sm:$0xff]
          %v1675 = vld [vmem:[%s1201 + $0x8] sm:$0xff]
          %v1676 = vrcp.pop %v1674
          %v1677 = vrcp.pop %v1675
          %v1678 = vld [vmem:[#allocation5] sm:$0xff]
          %v1679 = vld [vmem:[#allocation5 + $0x8] sm:$0xff]
          %1681 = vset.pattern.permute.xlu0 0
          %1682 = vperm.xlu0 %1681, %v1676
          %v1683 = vpop.permute.xlu0 %1682
          %1686 = vset.pattern.permute.xlu0 0
          %1687 = vperm.xlu0 %1686, %v1677
          %v1688 = vpop.permute.xlu0 %1687
          %v1690 = vmul.f32 %v1678, %v1683
          %v1691 = vmul.f32 %v1679, %v1688
          %1692 = vst.msk [vmem:[#allocation5] sm:$0xff] %vm1289, %v1690
          %1693 = vst.msk [vmem:[#allocation5 + $0x8] sm:$0xff] %vm1289, %v1691
          %v1694 = vld [vmem:[%s1380] sm:$0xff]
          %v1695 = vld [vmem:[%s1380 + $0x8] sm:$0xff]
          %v1696 = vrcp.pop %v1694
          %v1697 = vrcp.pop %v1695
          %v1698 = vld [vmem:[#allocation5] sm:$0xff]
          %v1699 = vld [vmem:[#allocation5 + $0x8] sm:$0xff]
          %1701 = vset.pattern.permute.xlu0 0
          %1702 = vperm.xlu0 %1701, %v1696
          %v1703 = vpop.permute.xlu0 %1702
          %1706 = vset.pattern.permute.xlu0 0
          %1707 = vperm.xlu0 %1706, %v1697
          %v1708 = vpop.permute.xlu0 %1707
          %v1710 = vmul.f32 %v1698, %v1703
          %v1711 = vmul.f32 %v1699, %v1708
          %1712 = vst.msk [vmem:[#allocation5] sm:$0xff] %vm1467, %v1710
          %1713 = vst.msk [vmem:[#allocation5 + $0x8] sm:$0xff] %vm1467, %v1711
          %v1714 = vld [vmem:[%s1558] sm:$0xff]
          %v1715 = vld [vmem:[%s1558 + $0x8] sm:$0xff]
          %v1716 = vrcp.pop %v1714
          %v1717 = vrcp.pop %v1715
          %v1718 = vld [vmem:[#allocation5] sm:$0xff]
          %v1719 = vld [vmem:[#allocation5 + $0x8] sm:$0xff]
          %1721 = vset.pattern.permute.xlu0 0
          %1722 = vperm.xlu0 %1721, %v1716
          %v1723 = vpop.permute.xlu0 %1722
          %1726 = vset.pattern.permute.xlu0 0
          %1727 = vperm.xlu0 %1726, %v1717
          %v1728 = vpop.permute.xlu0 %1727
          %v1730 = vmul.f32 %v1718, %v1723
          %v1731 = vmul.f32 %v1719, %v1728
          %1732 = vst.msk [vmem:[#allocation5] sm:$0xff] %vm1645, %v1730
          %1733 = vst.msk [vmem:[#allocation5 + $0x8] sm:$0xff] %vm1645, %v1731
          %v1734 = vld [vmem:[#allocation5] sm:$0xff]
          %v1735 = vld [vmem:[#allocation5 + $0x8] sm:$0xff]
          %v1736 = vpack.c.bf16 %v1735, %v1734
          %v1737 = vld [vmem:[#allocation17] sm:$0xf]
          %v1738 = vld [vmem:[#allocation17 + $0x4] sm:$0xf]
          %v1739 = vld [vmem:[#allocation17 + $0x8] sm:$0xf]
          %v1740 = vld [vmem:[#allocation17 + $0xc] sm:$0xf]
          %v1741 = vld [vmem:[#allocation17 + $0x10] sm:$0xf]
          %v1742 = vld [vmem:[#allocation17 + $0x14] sm:$0xf]
          %v1743 = vld [vmem:[#allocation17 + $0x18] sm:$0xf]
          %v1744 = vld [vmem:[#allocation17 + $0x1c] sm:$0xf]
          %v1745 = vld [vmem:[#allocation17 + $0x20] sm:$0xf]
          %v1746 = vld [vmem:[#allocation17 + $0x24] sm:$0xf]
          %v1747 = vld [vmem:[#allocation17 + $0x28] sm:$0xf]
          %v1748 = vld [vmem:[#allocation17 + $0x2c] sm:$0xf]
          %v1749 = vld [vmem:[#allocation17 + $0x30] sm:$0xf]
          %v1750 = vld [vmem:[#allocation17 + $0x34] sm:$0xf]
          %v1751 = vld [vmem:[#allocation17 + $0x38] sm:$0xf]
          %v1752 = vld [vmem:[#allocation17 + $0x3c] sm:$0xf]
          %v1753 = vld [vmem:[%s10] sm:$0x1]
          %v1755 = vlaneseq
          %v1756 = vshrl.u32 %v1755, 7
          %v1757 = vsub.s32 0, %v1756
          %v1758 = vrot.slane %v1753, %v1757
          %v1776 = vunpack.c.l.b16 %v1737
          %v1777 = vunpack.c.l.b16 %v1738
          %v1778 = vunpack.c.l.b16 %v1739
          %v1779 = vunpack.c.l.b16 %v1740
          %v1780 = vunpack.c.l.b16 %v1741
          %v1781 = vunpack.c.l.b16 %v1742
          %v1782 = vunpack.c.l.b16 %v1743
          %v1783 = vunpack.c.l.b16 %v1744
          %v1784 = vunpack.c.l.b16 %v1745
          %v1785 = vunpack.c.l.b16 %v1746
          %v1786 = vunpack.c.l.b16 %v1747
          %v1787 = vunpack.c.l.b16 %v1748
          %v1788 = vunpack.c.l.b16 %v1749
          %v1789 = vunpack.c.l.b16 %v1750
          %v1790 = vunpack.c.l.b16 %v1751
          %v1791 = vunpack.c.l.b16 %v1752
          %v1792 = vpack.c.b16 %v1777, %v1776
          %v1793 = vpack.c.b16 %v1779, %v1778
          %v1794 = vpack.c.b16 %v1781, %v1780
          %v1795 = vpack.c.b16 %v1783, %v1782
          %v1796 = vpack.c.b16 %v1785, %v1784
          %v1797 = vpack.c.b16 %v1787, %v1786
          %v1798 = vpack.c.b16 %v1789, %v1788
          %v1799 = vpack.c.b16 %v1791, %v1790
          %1808 = vmatprep.subr.bf16.mxu0 0
          %1809 = vmatpush1.bf16.msra.mxu0 %v1792
          %1810 = vmatprep.subr.bf16.mxu0 0
          %1811 = vmatpush1.bf16.msra.mxu0 %v1793
          %1812 = vmatprep.subr.bf16.mxu0 0
          %1813 = vmatpush1.bf16.msra.mxu0 %v1794
          %1814 = vmatprep.subr.bf16.mxu0 0
          %1815 = vmatpush1.bf16.msra.mxu0 %v1795
          %1816 = vmatprep.subr.bf16.mxu0 0
          %1817 = vmatpush1.bf16.msra.mxu0 %v1796
          %1818 = vmatprep.subr.bf16.mxu0 0
          %1819 = vmatpush1.bf16.msra.mxu0 %v1797
          %1820 = vmatprep.subr.bf16.mxu0 0
          %1821 = vmatpush1.bf16.msra.mxu0 %v1798
          %1822 = vmatprep.subr.bf16.mxu0 0
          %1823 = vmatpush1.bf16.msra.mxu0 %v1799
          %1824 = vmatprep.subr.bf16.mxu0 0
          %1825 = vmatpush1.bf16.msra.mxu0 0
          %1826 = vmatprep.subr.bf16.mxu0 0
          %1827 = vmatpush1.bf16.msra.mxu0 0
          %1828 = vmatprep.subr.bf16.mxu0 0
          %1829 = vmatpush1.bf16.msra.mxu0 0
          %1830 = vmatprep.subr.bf16.mxu0 0
          %1831 = vmatpush1.bf16.msra.mxu0 0
          %1832 = vmatprep.subr.bf16.mxu0 0
          %1833 = vmatpush1.bf16.msra.mxu0 0
          %1834 = vmatprep.subr.bf16.mxu0 0
          %1835 = vmatpush1.bf16.msra.mxu0 0
          %1836 = vmatprep.subr.bf16.mxu0 0
          %1837 = vmatpush1.bf16.msra.mxu0 0
          %1838 = vmatprep.subr.bf16.mxu0 0
          %1839 = vmatpush1.bf16.msra.mxu0 0
          %1840 = vmatprep.mubr.bf16.mxu0 0
          %1841 = vmatmul.mubr.bf16.gmra.mrb[0].mxu0 %v1736
          %v1842 = vpop.f32.mrb[0].mxu0
          %v1843 = vadd.f32 %v1758, %v1842
          %v1844 = vpop.f32.mrb[0].mxu0
          %v1845 = vpop.f32.mrb[0].mxu0
          %v1846 = vadd.f32 %v1758, %v1845
          %v1847 = vpop.f32.mrb[0].mxu0
          %1848 = vdwg.mxu0
          %1849 = vst [vmem:[%s572] sm:$0xff] %v1843
          %1850 = vst [vmem:[%s572 + $0x8] sm:$0xff] %v1846
        $region100: #{tpu_custom_call.1} parent=63 // pred_fallthru
          _
        %s1851 = sand.u32 %s314, 1
        %s1852 = scalar_lea.sflag [#allocation8], %s1851
        %s1853 = sand.u32 %s314, 1
        %s1854 = smul.addr %s1853, 16
        %s1855 = scalar_lea.vmem [#allocation18], %s1854
        // Predicated region
        $region101: #{tpu_custom_call.1} parent=63 // pred_check
          %p1856 = pneg %p324
        $region102: #{tpu_custom_call.1} parent=63 // pred_check_branch
          %1858 = sbr.rel (%p1856) target = $region104
        $region103: #{tpu_custom_call.1} parent=63 // pred_region
          %s1859 = smul.u32 2, %s39
          %s1861 = ssub.s32 256, 256
          %1862 = vsyncadd %s1852, %s1861
          %s1863 = smul.addr %s38, 4
          %s1864 = sadd.s32 %s1859, %s1863
          %s1865 = smul.addr %s1864, 128
          %s1866 = scalar_lea.hbm %s11, %s1865
          %s1867 = sshll.u32 %s1855, 4
          %s1868 = int_to_ptr.vmem [resolvable:$true] %s1867
          %1873 = dma.vmem_to_hbm [thread:$0]  %s1868, 256, %s1866, %s1852, 128, 128, 8
        $region104: #{tpu_custom_call.1} parent=63 // pred_fallthru
          _
      $region64: #{tpu_custom_call.1} parent=5 // pred_fallthru
        _
      %p1874 = scmp.le.s32.totalorder 2, %s28
      // Predicated region
      $region105: #{tpu_custom_call.1} parent=5 // pred_check
        %p1875 = pneg %p1874
      $region106: #{tpu_custom_call.1} parent=5 // pred_check_branch
        %1877 = sbr.rel (%p1875) target = $region108
      $region107: #{tpu_custom_call.1} parent=5 // pred_region
        %s1878 = ssub.s32 %s28, 2
        // Predicated region
        $region109: #{tpu_custom_call.1} parent=107 // pred_check
          %p1879 = pneg %p330
        $region110: #{tpu_custom_call.1} parent=107 // pred_check_branch
          %1881 = sbr.rel (%p1879) target = $region112
        $region111: #{tpu_custom_call.1} parent=107 // pred_region
          %s1882 = sand.u32 %s315, 1
          %s1883 = scalar_lea.sflag [#allocation8], %s1882
          %s1884 = sand.u32 %s315, 1
          %s1885 = smul.addr %s1884, 16
          %s1886 = scalar_lea.vmem [#allocation18], %s1885
          %1887 = dma.done %s1883, 256
        $region112: #{tpu_custom_call.1} parent=107 // pred_fallthru
          _
      $region108: #{tpu_custom_call.1} parent=5 // pred_fallthru
        _
    $region6: #{tpu_custom_call.1} parent=1 // loop_footer
      %s32 = sadd.s32 1, %s28
    $region7: #{tpu_custom_call.1} parent=1 // loop_footer_branch
      %27 = sbr.rel target = $region3
    $region8: #{tpu_custom_call.1} parent=1 // loop_exit
      _
    %1888 = vsyncpa [#allocation7], 1
    %s1889 = scalar_lea.sflag [#allocation7], 1
    %1890 = vsyncpa %s1889, 1
    %1891 = vsyncpa [#allocation10], 1
    %s1892 = scalar_lea.sflag [#allocation10], 1
    %1893 = vsyncpa %s1892, 1
    %1894 = vsyncpa [#allocation13], 1
    %1895 = vsyncpa [#allocation16], 1
    %1896 = vsyncpa [#allocation8], 1
    %s1897 = scalar_lea.sflag [#allocation8], 1
    %1898 = vsyncpa %s1897, 1

</llo_original>
